<compile_context>
chip_gen: v6e
topology: v6e:2x2x1
jax: 0.10.0
libtpu: 0.0.40
codegen_flags: <defaults>
</compile_context>

<pallas_src>
import math

import jax
import jax.numpy as jnp
import numpy as np
from jax.experimental import pallas as pl
from jax.experimental.pallas import tpu as pltpu

# ------------------------- model hyper-parameters --------------------------
FEATURE_SIZE = 1          # len(['Quantity'])
NUM_HEADS = 1
NUM_LAYERS = 3
DIM_FEEDFORWARD = 2048    # nn.TransformerEncoderLayer default
LN_EPS = 1e-5
INV_SQRT_EPS = 1.0 / math.sqrt(LN_EPS)   # rsqrt(0 + eps), folded at trace time

SC = 16                   # scalar-table stride per layer (13 used, padded to 16)
F_CHUNK = 512             # FFN lane-chunk width (4 chunks of 2048)


# ------------------------------- kernel ------------------------------------
def transformer_forward(x, params):
    """x: (B, S, 1) float32.  Returns (B,) float32 (== PyTorch .squeeze())."""
    (ipw_t, ipb, opw_t, opb, g1, be1, w1_t, b1, w2_t, b2, g2, be2,
     fcw_t, fcb) = params

    B, S, D = x.shape
    assert D == FEATURE_SIZE == 1, "kernel is specialized to d_model == 1"
    L = ipw_t.shape[0]
    F = w1_t.shape[-1]
    assert F % F_CHUNK == 0
    BS = B * S
    scale = 1.0 / math.sqrt(D / NUM_HEADS)          # == 1.0 for d_model == 1

    # ---- host/XLA-side parameter packing (tiny, outside the kernel) --------
    # scalar table row l = [wq wk wv bq bk bv wo bo g1 be1 g2 be2 b2 0 0 0],
    # last row = [fc_w fc_b 0 ...]; whole table lives in SMEM.
    rows = []
    for l in range(L):
        row = jnp.stack([
            ipw_t[l, 0, 0], ipw_t[l, 0, 1], ipw_t[l, 0, 2],
            ipb[l, 0, 0], ipb[l, 0, 1], ipb[l, 0, 2],
            opw_t[l, 0, 0], opb[l, 0, 0],
            g1[l, 0, 0], be1[l, 0, 0],
            g2[l, 0, 0], be2[l, 0, 0],
            b2[l, 0, 0],
        ])
        rows.append(jnp.pad(row, (0, SC - row.shape[0])))
    rows.append(jnp.pad(jnp.stack([fcw_t[0, 0], fcb[0, 0]]), (0, SC - 2)))
    scal = jnp.stack(rows).astype(jnp.float32)               # (L+1, SC)

    # Single dense weight slab: row 3l+0 = w1[l], 3l+1 = b1[l], 3l+2 = w2[l].
    w_rows = []
    for l in range(L):
        w_rows += [w1_t[l, 0, :], b1[l, 0, :], w2_t[l, :, 0]]
    w_slab = jnp.stack(w_rows).astype(jnp.float32)           # (3L, F)

    x_col = x.reshape(BS, D).astype(jnp.float32)             # (BS, 1)

    def kernel(x_ref, scal_ref, w_ref, out_ref):
        h = x_col_load = x_ref[...]                          # (BS, 1)
        del x_col_load

        # Hoisted (S,S) identity: turns a per-sequence (S,1) column into a
        # (1,S) row via a masked sublane reduce (supported at this tiny,
        # non-(8,128)-aligned shape where a real transpose is not).
        ri = jax.lax.broadcasted_iota(jnp.int32, (S, S), 0)
        ci = jax.lax.broadcasted_iota(jnp.int32, (S, S), 1)
        eye_s = (ri == ci).astype(jnp.float32)               # (S, S)

        def ln_d1(v, gamma, beta):
            # LayerNorm over the size-1 feature axis: mean == v, var == 0, so
            # the result is exactly `beta` (identical to the generic formula
            # for finite v).  The (v - v) term keeps the upstream data path
            # live; the reductions and runtime rsqrt are gone (review item 3).
            return (v - v) * (gamma * INV_SQRT_EPS) + beta

        for l in range(L):                                   # 3 layers, unrolled
            wq, wk, wv = scal_ref[l, 0], scal_ref[l, 1], scal_ref[l, 2]
            bq, bk, bv = scal_ref[l, 3], scal_ref[l, 4], scal_ref[l, 5]
            wo, bo = scal_ref[l, 6], scal_ref[l, 7]
            gamma1, beta1 = scal_ref[l, 8], scal_ref[l, 9]
            gamma2, beta2 = scal_ref[l, 10], scal_ref[l, 11]
            b2s = scal_ref[l, 12]

            # ---- per-sequence self-attention (d_model=1): VPU/XLU/EUP only --
            attn_cols = []
            for b in range(B):                               # B unrolled
                hb = h[b * S:(b + 1) * S, :]                 # (S, 1)
                hb_row = jnp.sum(hb * eye_s, axis=0, keepdims=True)   # (1, S)
                qb = hb * wq + bq                            # (S, 1)
                kb = hb_row * wk + bk                        # (1, S)
                vb = hb_row * wv + bv                        # (1, S)

                s = qb * kb                                  # (S, S) outer prod
                if scale != 1.0:                             # statically 1.0
                    s = s * scale
                m = jnp.max(s, axis=-1, keepdims=True)       # (S, 1)
                e = jnp.exp(s - m)                           # (S, S)
                num = jnp.sum(e * vb, axis=-1, keepdims=True)    # (S, 1)
                den = jnp.sum(e, axis=-1, keepdims=True)         # (S, 1)
                # Deferred softmax normalization (review item 4); approx
                # reciprocal runs on the EUP (exact 1/x is the safe fallback).
                attn_cols.append(num * pl.reciprocal(den, approx=True))
            attn = jnp.concatenate(attn_cols, axis=0)        # (BS, 1)
            attn = attn * wo + bo                            # out_proj

            x1 = ln_d1(h + attn, gamma1, beta1)              # (BS, 1)

            # ---- feed-forward, chunked over F (fused relu*w2 + reduce) -----
            # x1 broadcast hoisted out of the chunk loop (review item 1).
            x1_b = jnp.broadcast_to(x1, (BS, F_CHUNK))       # (BS, F_CHUNK)
            ff = jnp.zeros((BS, 1), jnp.float32)
            for c0 in range(0, F, F_CHUNK):
                w1c = w_ref[3 * l + 0:3 * l + 1, c0:c0 + F_CHUNK]   # (1, F_CHUNK)
                b1c = w_ref[3 * l + 1:3 * l + 2, c0:c0 + F_CHUNK]
                w2c = w_ref[3 * l + 2:3 * l + 3, c0:c0 + F_CHUNK]
                hid = jnp.maximum(x1_b * w1c + b1c, 0.0)     # (BS, F_CHUNK)
                ff = ff + jnp.sum(hid * w2c, axis=-1, keepdims=True)
            ff = ff + b2s

            h = ln_d1(x1 + ff, gamma2, beta2)                # (BS, 1)

        # ---- fc head on the last time step of each sequence (static slices) -
        fcw = scal_ref[L, 0]
        fcb_s = scal_ref[L, 1]
        for b in range(B):
            last_b = h[(b + 1) * S - 1:(b + 1) * S, :]       # (1, 1)
            out_ref[b:b + 1, :] = last_b * fcw + fcb_s

    out = pl.pallas_call(
        kernel,
        out_shape=jax.ShapeDtypeStruct((B, 1), jnp.float32),
        in_specs=[
            pl.BlockSpec(memory_space=pltpu.MemorySpace.VMEM),   # x (BS, 1)
            pl.BlockSpec(memory_space=pltpu.MemorySpace.SMEM),   # scalar table
            pl.BlockSpec(memory_space=pltpu.MemorySpace.VMEM),   # packed (3L, F)
        ],
        out_specs=pl.BlockSpec(memory_space=pltpu.MemorySpace.VMEM),
    )(x_col, scal, w_slab)
    return out[:, 0]   # .squeeze()


# --------------------------- pure-JAX reference -----------------------------
def reference_forward(x, params):
    (ipw_t, ipb, opw_t, opb, g1, be1, w1_t, b1, w2_t, b2, g2, be2,
     fcw_t, fcb) = params
    B, S, D = x.shape
    L = ipw_t.shape[0]
    scale = 1.0 / math.sqrt(D / NUM_HEADS)

    def layer_norm(v, g, b):
        mu = jnp.mean(v, -1, keepdims=True)
        var = jnp.mean((v - mu) ** 2, -1, keepdims=True)
        return (v - mu) * jax.lax.rsqrt(var + LN_EPS) * g + b

    h = x
    for l in range(L):
        qkv = h @ ipw_t[l] + ipb[l]
        q, k, v = qkv[..., :D], qkv[..., D:2 * D], qkv[..., 2 * D:]
        s = jnp.einsum('bqd,bkd->bqk', q, k) * scale
        p = jax.nn.softmax(s, axis=-1)
        attn = jnp.einsum('bqk,bkd->bqd', p, v) @ opw_t[l] + opb[l]
        x1 = layer_norm(h + attn, g1[l], be1[l])
        ff = jnp.maximum(x1 @ w1_t[l] + b1[l], 0.0) @ w2_t[l] + b2[l]
        h = layer_norm(x1 + ff, g2[l], be2[l])
    last = h[:, -1, :]
    return (last @ fcw_t + fcb)[:, 0]


# ------------------------------- params ------------------------------------
def init_params(key, L, D, F):
    ks = jax.random.split(key, 14)

    def u(k, shape, s=0.5):
        return jax.random.uniform(k, shape, jnp.float32, -s, s)

    ipw_t = u(ks[0], (L, D, 3 * D))   # in_proj_weight.T  (per layer)
    ipb = u(ks[1], (L, 1, 3 * D))     # in_proj_bias
    opw_t = u(ks[2], (L, D, D))       # out_proj.weight.T
    opb = u(ks[3], (L, 1, D))         # out_proj.bias
    g1 = 1.0 + u(ks[4], (L, 1, D), 0.1)    # norm1.weight
    be1 = u(ks[5], (L, 1, D), 0.1)         # norm1.bias
    w1_t = u(ks[6], (L, D, F), 0.3)   # linear1.weight.T
    b1 = u(ks[7], (L, 1, F), 0.3)     # linear1.bias
    w2_t = u(ks[8], (L, F, D), 0.05)  # linear2.weight.T
    b2 = u(ks[9], (L, 1, D), 0.3)     # linear2.bias
    g2 = 1.0 + u(ks[10], (L, 1, D), 0.1)   # norm2.weight
    be2 = u(ks[11], (L, 1, D), 0.1)        # norm2.bias
    fcw_t = u(ks[12], (D, 1))         # fc.weight.T
    fcb = u(ks[13], (1, 1))           # fc.bias
    return (ipw_t, ipb, opw_t, opb, g1, be1, w1_t, b1, w2_t, b2, g2, be2,
            fcw_t, fcb)


# -------------------------------- main --------------------------------------
if __name__ == "__main__":
    key = jax.random.PRNGKey(0)
    k_x, k_p = jax.random.split(key)

    B, S, D, F, L = 2, 8, FEATURE_SIZE, DIM_FEEDFORWARD, NUM_LAYERS
    x = jax.random.normal(k_x, (B, S, D), jnp.float32)
    params = init_params(k_p, L, D, F)

    out = jax.block_until_ready(transformer_forward(x, params))

    ref = jax.block_until_ready(reference_forward(x, params))
    np.testing.assert_allclose(np.asarray(out), np.asarray(ref),
                               rtol=1e-4, atol=1e-5)
    assert out.shape == (B,)
    print("KERNEL_OK")
</pallas_src>

<mosaic_0001>
module attributes {stable_mosaic.version = 11 : i64} {
  func.func @kernel(%arg0: memref<16x1xf32, #tpu.memory_space<vmem>>, %arg1: memref<4x16xf32, #tpu.memory_space<smem>>, %arg2: memref<9x2048xf32, #tpu.memory_space<vmem>>, %arg3: memref<2x1xf32, #tpu.memory_space<vmem>>) attributes {dimension_semantics = [], scalar_prefetch = 0 : i64, scratch_operands = 0 : i64, tpu.core_type = #tpu.core_type<tc>} {
    %c0 = arith.constant 0 : index
    %c0_0 = arith.constant 0 : index
    %0 = vector.load %arg0[%c0, %c0_0] : memref<16x1xf32, #tpu.memory_space<vmem>>, vector<16x1xf32>
    %1 = tpu.iota {dimensions = array<i32: 0>} : vector<8x8xi32>
    %2 = tpu.iota {dimensions = array<i32: 1>} : vector<8x8xi32>
    %3 = arith.cmpi eq, %1, %2 : vector<8x8xi32>
    %4 = arith.extui %3 : vector<8x8xi1> to vector<8x8xi32>
    %5 = arith.sitofp %4 : vector<8x8xi32> to vector<8x8xf32>
    %c0_1 = arith.constant 0 : index
    %c0_2 = arith.constant 0 : index
    %6 = memref.load %arg1[%c0_1, %c0_2] : memref<4x16xf32, #tpu.memory_space<smem>>
    %c0_3 = arith.constant 0 : index
    %c1 = arith.constant 1 : index
    %7 = memref.load %arg1[%c0_3, %c1] : memref<4x16xf32, #tpu.memory_space<smem>>
    %c0_4 = arith.constant 0 : index
    %c2 = arith.constant 2 : index
    %8 = memref.load %arg1[%c0_4, %c2] : memref<4x16xf32, #tpu.memory_space<smem>>
    %c0_5 = arith.constant 0 : index
    %c3 = arith.constant 3 : index
    %9 = memref.load %arg1[%c0_5, %c3] : memref<4x16xf32, #tpu.memory_space<smem>>
    %c0_6 = arith.constant 0 : index
    %c4 = arith.constant 4 : index
    %10 = memref.load %arg1[%c0_6, %c4] : memref<4x16xf32, #tpu.memory_space<smem>>
    %c0_7 = arith.constant 0 : index
    %c5 = arith.constant 5 : index
    %11 = memref.load %arg1[%c0_7, %c5] : memref<4x16xf32, #tpu.memory_space<smem>>
    %c0_8 = arith.constant 0 : index
    %c6 = arith.constant 6 : index
    %12 = memref.load %arg1[%c0_8, %c6] : memref<4x16xf32, #tpu.memory_space<smem>>
    %c0_9 = arith.constant 0 : index
    %c7 = arith.constant 7 : index
    %13 = memref.load %arg1[%c0_9, %c7] : memref<4x16xf32, #tpu.memory_space<smem>>
    %c0_10 = arith.constant 0 : index
    %c8 = arith.constant 8 : index
    %14 = memref.load %arg1[%c0_10, %c8] : memref<4x16xf32, #tpu.memory_space<smem>>
    %c0_11 = arith.constant 0 : index
    %c9 = arith.constant 9 : index
    %15 = memref.load %arg1[%c0_11, %c9] : memref<4x16xf32, #tpu.memory_space<smem>>
    %c0_12 = arith.constant 0 : index
    %c10 = arith.constant 10 : index
    %16 = memref.load %arg1[%c0_12, %c10] : memref<4x16xf32, #tpu.memory_space<smem>>
    %c0_13 = arith.constant 0 : index
    %c11 = arith.constant 11 : index
    %17 = memref.load %arg1[%c0_13, %c11] : memref<4x16xf32, #tpu.memory_space<smem>>
    %c0_14 = arith.constant 0 : index
    %c12 = arith.constant 12 : index
    %18 = memref.load %arg1[%c0_14, %c12] : memref<4x16xf32, #tpu.memory_space<smem>>
    %19 = vector.extract_strided_slice %0 {offsets = [0, 0], sizes = [8, 1], strides = [1, 1]} : vector<16x1xf32> to vector<8x1xf32>
    %20 = vector.broadcast %19 : vector<8x1xf32> to vector<8x8xf32>
    %21 = arith.mulf %20, %5 : vector<8x8xf32>
    %cst = arith.constant dense<0.000000e+00> : vector<8xf32>
    %22 = vector.multi_reduction <add>, %21, %cst [0] : vector<8x8xf32> to vector<8xf32>
    %23 = vector.shape_cast %22 : vector<8xf32> to vector<1x8xf32>
    %24 = vector.broadcast %6 : f32 to vector<8x1xf32>
    %25 = arith.mulf %19, %24 : vector<8x1xf32>
    %26 = vector.broadcast %9 : f32 to vector<8x1xf32>
    %27 = arith.addf %25, %26 : vector<8x1xf32>
    %28 = vector.broadcast %7 : f32 to vector<1x8xf32>
    %29 = arith.mulf %23, %28 : vector<1x8xf32>
    %30 = vector.broadcast %10 : f32 to vector<1x8xf32>
    %31 = arith.addf %29, %30 : vector<1x8xf32>
    %32 = vector.broadcast %8 : f32 to vector<1x8xf32>
    %33 = arith.mulf %23, %32 : vector<1x8xf32>
    %34 = vector.broadcast %11 : f32 to vector<1x8xf32>
    %35 = arith.addf %33, %34 : vector<1x8xf32>
    %36 = vector.broadcast %27 : vector<8x1xf32> to vector<8x8xf32>
    %37 = vector.broadcast %31 : vector<1x8xf32> to vector<8x8xf32>
    %38 = arith.mulf %36, %37 : vector<8x8xf32>
    %cst_15 = arith.constant dense<0xFF800000> : vector<8xf32>
    %39 = vector.multi_reduction <maximumf>, %38, %cst_15 [1] : vector<8x8xf32> to vector<8xf32>
    %40 = vector.shape_cast %39 : vector<8xf32> to vector<8x1xf32>
    %41 = vector.broadcast %40 : vector<8x1xf32> to vector<8x8xf32>
    %42 = arith.subf %38, %41 : vector<8x8xf32>
    %43 = math.exp %42 : vector<8x8xf32>
    %44 = vector.broadcast %35 : vector<1x8xf32> to vector<8x8xf32>
    %45 = arith.mulf %43, %44 : vector<8x8xf32>
    %cst_16 = arith.constant dense<0.000000e+00> : vector<8xf32>
    %46 = vector.multi_reduction <add>, %45, %cst_16 [1] : vector<8x8xf32> to vector<8xf32>
    %47 = vector.shape_cast %46 : vector<8xf32> to vector<8x1xf32>
    %cst_17 = arith.constant dense<0.000000e+00> : vector<8xf32>
    %48 = vector.multi_reduction <add>, %43, %cst_17 [1] : vector<8x8xf32> to vector<8xf32>
    %49 = vector.shape_cast %48 : vector<8xf32> to vector<8x1xf32>
    %50 = tpu.reciprocal %49 {approx = true} : vector<8x1xf32> -> vector<8x1xf32>
    %51 = arith.mulf %47, %50 : vector<8x1xf32>
    %52 = vector.extract_strided_slice %0 {offsets = [8, 0], sizes = [8, 1], strides = [1, 1]} : vector<16x1xf32> to vector<8x1xf32>
    %53 = vector.broadcast %52 : vector<8x1xf32> to vector<8x8xf32>
    %54 = arith.mulf %53, %5 : vector<8x8xf32>
    %cst_18 = arith.constant dense<0.000000e+00> : vector<8xf32>
    %55 = vector.multi_reduction <add>, %54, %cst_18 [0] : vector<8x8xf32> to vector<8xf32>
    %56 = vector.shape_cast %55 : vector<8xf32> to vector<1x8xf32>
    %57 = vector.broadcast %6 : f32 to vector<8x1xf32>
    %58 = arith.mulf %52, %57 : vector<8x1xf32>
    %59 = vector.broadcast %9 : f32 to vector<8x1xf32>
    %60 = arith.addf %58, %59 : vector<8x1xf32>
    %61 = vector.broadcast %7 : f32 to vector<1x8xf32>
    %62 = arith.mulf %56, %61 : vector<1x8xf32>
    %63 = vector.broadcast %10 : f32 to vector<1x8xf32>
    %64 = arith.addf %62, %63 : vector<1x8xf32>
    %65 = vector.broadcast %8 : f32 to vector<1x8xf32>
    %66 = arith.mulf %56, %65 : vector<1x8xf32>
    %67 = vector.broadcast %11 : f32 to vector<1x8xf32>
    %68 = arith.addf %66, %67 : vector<1x8xf32>
    %69 = vector.broadcast %60 : vector<8x1xf32> to vector<8x8xf32>
    %70 = vector.broadcast %64 : vector<1x8xf32> to vector<8x8xf32>
    %71 = arith.mulf %69, %70 : vector<8x8xf32>
    %cst_19 = arith.constant dense<0xFF800000> : vector<8xf32>
    %72 = vector.multi_reduction <maximumf>, %71, %cst_19 [1] : vector<8x8xf32> to vector<8xf32>
    %73 = vector.shape_cast %72 : vector<8xf32> to vector<8x1xf32>
    %74 = vector.broadcast %73 : vector<8x1xf32> to vector<8x8xf32>
    %75 = arith.subf %71, %74 : vector<8x8xf32>
    %76 = math.exp %75 : vector<8x8xf32>
    %77 = vector.broadcast %68 : vector<1x8xf32> to vector<8x8xf32>
    %78 = arith.mulf %76, %77 : vector<8x8xf32>
    %cst_20 = arith.constant dense<0.000000e+00> : vector<8xf32>
    %79 = vector.multi_reduction <add>, %78, %cst_20 [1] : vector<8x8xf32> to vector<8xf32>
    %80 = vector.shape_cast %79 : vector<8xf32> to vector<8x1xf32>
    %cst_21 = arith.constant dense<0.000000e+00> : vector<8xf32>
    %81 = vector.multi_reduction <add>, %76, %cst_21 [1] : vector<8x8xf32> to vector<8xf32>
    %82 = vector.shape_cast %81 : vector<8xf32> to vector<8x1xf32>
    %83 = tpu.reciprocal %82 {approx = true} : vector<8x1xf32> -> vector<8x1xf32>
    %84 = arith.mulf %80, %83 : vector<8x1xf32>
    %85 = tpu.concatenate %51, %84 in 0 : vector<8x1xf32>, vector<8x1xf32> -> vector<16x1xf32>
    %86 = vector.broadcast %12 : f32 to vector<16x1xf32>
    %87 = arith.mulf %85, %86 : vector<16x1xf32>
    %88 = vector.broadcast %13 : f32 to vector<16x1xf32>
    %89 = arith.addf %87, %88 : vector<16x1xf32>
    %90 = arith.addf %0, %89 : vector<16x1xf32>
    %91 = arith.subf %90, %90 : vector<16x1xf32>
    %cst_22 = arith.constant 316.227753 : f32
    %92 = arith.mulf %14, %cst_22 : f32
    %93 = vector.broadcast %92 : f32 to vector<16x1xf32>
    %94 = arith.mulf %91, %93 : vector<16x1xf32>
    %95 = vector.broadcast %15 : f32 to vector<16x1xf32>
    %96 = arith.addf %94, %95 : vector<16x1xf32>
    %97 = vector.shape_cast %96 : vector<16x1xf32> to vector<16x1xf32>
    %98 = vector.broadcast %97 : vector<16x1xf32> to vector<16x512xf32>
    %cst_23 = arith.constant 0.000000e+00 : f32
    %99 = vector.broadcast %cst_23 : f32 to vector<16x1xf32>
    %c0_24 = arith.constant 0 : index
    %c0_25 = arith.constant 0 : index
    %100 = vector.load %arg2[%c0_24, %c0_25] : memref<9x2048xf32, #tpu.memory_space<vmem>>, vector<1x512xf32>
    %c1_26 = arith.constant 1 : index
    %c0_27 = arith.constant 0 : index
    %101 = vector.load %arg2[%c1_26, %c0_27] : memref<9x2048xf32, #tpu.memory_space<vmem>>, vector<1x512xf32>
    %c2_28 = arith.constant 2 : index
    %c0_29 = arith.constant 0 : index
    %102 = vector.load %arg2[%c2_28, %c0_29] : memref<9x2048xf32, #tpu.memory_space<vmem>>, vector<1x512xf32>
    %103 = vector.broadcast %100 : vector<1x512xf32> to vector<16x512xf32>
    %104 = arith.mulf %98, %103 : vector<16x512xf32>
    %105 = vector.broadcast %101 : vector<1x512xf32> to vector<16x512xf32>
    %106 = arith.addf %104, %105 : vector<16x512xf32>
    %cst_30 = arith.constant 0.000000e+00 : f32
    %107 = vector.broadcast %cst_30 : f32 to vector<16x512xf32>
    %108 = arith.maximumf %106, %107 : vector<16x512xf32>
    %109 = vector.broadcast %102 : vector<1x512xf32> to vector<16x512xf32>
    %110 = arith.mulf %108, %109 : vector<16x512xf32>
    %cst_31 = arith.constant dense<0.000000e+00> : vector<16xf32>
    %111 = vector.multi_reduction <add>, %110, %cst_31 [1] : vector<16x512xf32> to vector<16xf32>
    %112 = vector.shape_cast %111 : vector<16xf32> to vector<16x1xf32>
    %113 = arith.addf %99, %112 : vector<16x1xf32>
    %c0_32 = arith.constant 0 : index
    %c512 = arith.constant 512 : index
    %114 = vector.load %arg2[%c0_32, %c512] : memref<9x2048xf32, #tpu.memory_space<vmem>>, vector<1x512xf32>
    %c1_33 = arith.constant 1 : index
    %c512_34 = arith.constant 512 : index
    %115 = vector.load %arg2[%c1_33, %c512_34] : memref<9x2048xf32, #tpu.memory_space<vmem>>, vector<1x512xf32>
    %c2_35 = arith.constant 2 : index
    %c512_36 = arith.constant 512 : index
    %116 = vector.load %arg2[%c2_35, %c512_36] : memref<9x2048xf32, #tpu.memory_space<vmem>>, vector<1x512xf32>
    %117 = vector.broadcast %114 : vector<1x512xf32> to vector<16x512xf32>
    %118 = arith.mulf %98, %117 : vector<16x512xf32>
    %119 = vector.broadcast %115 : vector<1x512xf32> to vector<16x512xf32>
    %120 = arith.addf %118, %119 : vector<16x512xf32>
    %cst_37 = arith.constant 0.000000e+00 : f32
    %121 = vector.broadcast %cst_37 : f32 to vector<16x512xf32>
    %122 = arith.maximumf %120, %121 : vector<16x512xf32>
    %123 = vector.broadcast %116 : vector<1x512xf32> to vector<16x512xf32>
    %124 = arith.mulf %122, %123 : vector<16x512xf32>
    %cst_38 = arith.constant dense<0.000000e+00> : vector<16xf32>
    %125 = vector.multi_reduction <add>, %124, %cst_38 [1] : vector<16x512xf32> to vector<16xf32>
    %126 = vector.shape_cast %125 : vector<16xf32> to vector<16x1xf32>
    %127 = arith.addf %113, %126 : vector<16x1xf32>
    %c0_39 = arith.constant 0 : index
    %c1024 = arith.constant 1024 : index
    %128 = vector.load %arg2[%c0_39, %c1024] : memref<9x2048xf32, #tpu.memory_space<vmem>>, vector<1x512xf32>
    %c1_40 = arith.constant 1 : index
    %c1024_41 = arith.constant 1024 : index
    %129 = vector.load %arg2[%c1_40, %c1024_41] : memref<9x2048xf32, #tpu.memory_space<vmem>>, vector<1x512xf32>
    %c2_42 = arith.constant 2 : index
    %c1024_43 = arith.constant 1024 : index
    %130 = vector.load %arg2[%c2_42, %c1024_43] : memref<9x2048xf32, #tpu.memory_space<vmem>>, vector<1x512xf32>
    %131 = vector.broadcast %128 : vector<1x512xf32> to vector<16x512xf32>
    %132 = arith.mulf %98, %131 : vector<16x512xf32>
    %133 = vector.broadcast %129 : vector<1x512xf32> to vector<16x512xf32>
    %134 = arith.addf %132, %133 : vector<16x512xf32>
    %cst_44 = arith.constant 0.000000e+00 : f32
    %135 = vector.broadcast %cst_44 : f32 to vector<16x512xf32>
    %136 = arith.maximumf %134, %135 : vector<16x512xf32>
    %137 = vector.broadcast %130 : vector<1x512xf32> to vector<16x512xf32>
    %138 = arith.mulf %136, %137 : vector<16x512xf32>
    %cst_45 = arith.constant dense<0.000000e+00> : vector<16xf32>
    %139 = vector.multi_reduction <add>, %138, %cst_45 [1] : vector<16x512xf32> to vector<16xf32>
    %140 = vector.shape_cast %139 : vector<16xf32> to vector<16x1xf32>
    %141 = arith.addf %127, %140 : vector<16x1xf32>
    %c0_46 = arith.constant 0 : index
    %c1536 = arith.constant 1536 : index
    %142 = vector.load %arg2[%c0_46, %c1536] : memref<9x2048xf32, #tpu.memory_space<vmem>>, vector<1x512xf32>
    %c1_47 = arith.constant 1 : index
    %c1536_48 = arith.constant 1536 : index
    %143 = vector.load %arg2[%c1_47, %c1536_48] : memref<9x2048xf32, #tpu.memory_space<vmem>>, vector<1x512xf32>
    %c2_49 = arith.constant 2 : index
    %c1536_50 = arith.constant 1536 : index
    %144 = vector.load %arg2[%c2_49, %c1536_50] : memref<9x2048xf32, #tpu.memory_space<vmem>>, vector<1x512xf32>
    %145 = vector.broadcast %142 : vector<1x512xf32> to vector<16x512xf32>
    %146 = arith.mulf %98, %145 : vector<16x512xf32>
    %147 = vector.broadcast %143 : vector<1x512xf32> to vector<16x512xf32>
    %148 = arith.addf %146, %147 : vector<16x512xf32>
    %cst_51 = arith.constant 0.000000e+00 : f32
    %149 = vector.broadcast %cst_51 : f32 to vector<16x512xf32>
    %150 = arith.maximumf %148, %149 : vector<16x512xf32>
    %151 = vector.broadcast %144 : vector<1x512xf32> to vector<16x512xf32>
    %152 = arith.mulf %150, %151 : vector<16x512xf32>
    %cst_52 = arith.constant dense<0.000000e+00> : vector<16xf32>
    %153 = vector.multi_reduction <add>, %152, %cst_52 [1] : vector<16x512xf32> to vector<16xf32>
    %154 = vector.shape_cast %153 : vector<16xf32> to vector<16x1xf32>
    %155 = arith.addf %141, %154 : vector<16x1xf32>
    %156 = vector.broadcast %18 : f32 to vector<16x1xf32>
    %157 = arith.addf %155, %156 : vector<16x1xf32>
    %158 = arith.addf %96, %157 : vector<16x1xf32>
    %159 = arith.subf %158, %158 : vector<16x1xf32>
    %cst_53 = arith.constant 316.227753 : f32
    %160 = arith.mulf %16, %cst_53 : f32
    %161 = vector.broadcast %160 : f32 to vector<16x1xf32>
    %162 = arith.mulf %159, %161 : vector<16x1xf32>
    %163 = vector.broadcast %17 : f32 to vector<16x1xf32>
    %164 = arith.addf %162, %163 : vector<16x1xf32>
    %c1_54 = arith.constant 1 : index
    %c0_55 = arith.constant 0 : index
    %165 = memref.load %arg1[%c1_54, %c0_55] : memref<4x16xf32, #tpu.memory_space<smem>>
    %c1_56 = arith.constant 1 : index
    %c1_57 = arith.constant 1 : index
    %166 = memref.load %arg1[%c1_56, %c1_57] : memref<4x16xf32, #tpu.memory_space<smem>>
    %c1_58 = arith.constant 1 : index
    %c2_59 = arith.constant 2 : index
    %167 = memref.load %arg1[%c1_58, %c2_59] : memref<4x16xf32, #tpu.memory_space<smem>>
    %c1_60 = arith.constant 1 : index
    %c3_61 = arith.constant 3 : index
    %168 = memref.load %arg1[%c1_60, %c3_61] : memref<4x16xf32, #tpu.memory_space<smem>>
    %c1_62 = arith.constant 1 : index
    %c4_63 = arith.constant 4 : index
    %169 = memref.load %arg1[%c1_62, %c4_63] : memref<4x16xf32, #tpu.memory_space<smem>>
    %c1_64 = arith.constant 1 : index
    %c5_65 = arith.constant 5 : index
    %170 = memref.load %arg1[%c1_64, %c5_65] : memref<4x16xf32, #tpu.memory_space<smem>>
    %c1_66 = arith.constant 1 : index
    %c6_67 = arith.constant 6 : index
    %171 = memref.load %arg1[%c1_66, %c6_67] : memref<4x16xf32, #tpu.memory_space<smem>>
    %c1_68 = arith.constant 1 : index
    %c7_69 = arith.constant 7 : index
    %172 = memref.load %arg1[%c1_68, %c7_69] : memref<4x16xf32, #tpu.memory_space<smem>>
    %c1_70 = arith.constant 1 : index
    %c8_71 = arith.constant 8 : index
    %173 = memref.load %arg1[%c1_70, %c8_71] : memref<4x16xf32, #tpu.memory_space<smem>>
    %c1_72 = arith.constant 1 : index
    %c9_73 = arith.constant 9 : index
    %174 = memref.load %arg1[%c1_72, %c9_73] : memref<4x16xf32, #tpu.memory_space<smem>>
    %c1_74 = arith.constant 1 : index
    %c10_75 = arith.constant 10 : index
    %175 = memref.load %arg1[%c1_74, %c10_75] : memref<4x16xf32, #tpu.memory_space<smem>>
    %c1_76 = arith.constant 1 : index
    %c11_77 = arith.constant 11 : index
    %176 = memref.load %arg1[%c1_76, %c11_77] : memref<4x16xf32, #tpu.memory_space<smem>>
    %c1_78 = arith.constant 1 : index
    %c12_79 = arith.constant 12 : index
    %177 = memref.load %arg1[%c1_78, %c12_79] : memref<4x16xf32, #tpu.memory_space<smem>>
    %178 = vector.extract_strided_slice %164 {offsets = [0, 0], sizes = [8, 1], strides = [1, 1]} : vector<16x1xf32> to vector<8x1xf32>
    %179 = vector.broadcast %178 : vector<8x1xf32> to vector<8x8xf32>
    %180 = arith.mulf %179, %5 : vector<8x8xf32>
    %cst_80 = arith.constant dense<0.000000e+00> : vector<8xf32>
    %181 = vector.multi_reduction <add>, %180, %cst_80 [0] : vector<8x8xf32> to vector<8xf32>
    %182 = vector.shape_cast %181 : vector<8xf32> to vector<1x8xf32>
    %183 = vector.broadcast %165 : f32 to vector<8x1xf32>
    %184 = arith.mulf %178, %183 : vector<8x1xf32>
    %185 = vector.broadcast %168 : f32 to vector<8x1xf32>
    %186 = arith.addf %184, %185 : vector<8x1xf32>
    %187 = vector.broadcast %166 : f32 to vector<1x8xf32>
    %188 = arith.mulf %182, %187 : vector<1x8xf32>
    %189 = vector.broadcast %169 : f32 to vector<1x8xf32>
    %190 = arith.addf %188, %189 : vector<1x8xf32>
    %191 = vector.broadcast %167 : f32 to vector<1x8xf32>
    %192 = arith.mulf %182, %191 : vector<1x8xf32>
    %193 = vector.broadcast %170 : f32 to vector<1x8xf32>
    %194 = arith.addf %192, %193 : vector<1x8xf32>
    %195 = vector.broadcast %186 : vector<8x1xf32> to vector<8x8xf32>
    %196 = vector.broadcast %190 : vector<1x8xf32> to vector<8x8xf32>
    %197 = arith.mulf %195, %196 : vector<8x8xf32>
    %cst_81 = arith.constant dense<0xFF800000> : vector<8xf32>
    %198 = vector.multi_reduction <maximumf>, %197, %cst_81 [1] : vector<8x8xf32> to vector<8xf32>
    %199 = vector.shape_cast %198 : vector<8xf32> to vector<8x1xf32>
    %200 = vector.broadcast %199 : vector<8x1xf32> to vector<8x8xf32>
    %201 = arith.subf %197, %200 : vector<8x8xf32>
    %202 = math.exp %201 : vector<8x8xf32>
    %203 = vector.broadcast %194 : vector<1x8xf32> to vector<8x8xf32>
    %204 = arith.mulf %202, %203 : vector<8x8xf32>
    %cst_82 = arith.constant dense<0.000000e+00> : vector<8xf32>
    %205 = vector.multi_reduction <add>, %204, %cst_82 [1] : vector<8x8xf32> to vector<8xf32>
    %206 = vector.shape_cast %205 : vector<8xf32> to vector<8x1xf32>
    %cst_83 = arith.constant dense<0.000000e+00> : vector<8xf32>
    %207 = vector.multi_reduction <add>, %202, %cst_83 [1] : vector<8x8xf32> to vector<8xf32>
    %208 = vector.shape_cast %207 : vector<8xf32> to vector<8x1xf32>
    %209 = tpu.reciprocal %208 {approx = true} : vector<8x1xf32> -> vector<8x1xf32>
    %210 = arith.mulf %206, %209 : vector<8x1xf32>
    %211 = vector.extract_strided_slice %164 {offsets = [8, 0], sizes = [8, 1], strides = [1, 1]} : vector<16x1xf32> to vector<8x1xf32>
    %212 = vector.broadcast %211 : vector<8x1xf32> to vector<8x8xf32>
    %213 = arith.mulf %212, %5 : vector<8x8xf32>
    %cst_84 = arith.constant dense<0.000000e+00> : vector<8xf32>
    %214 = vector.multi_reduction <add>, %213, %cst_84 [0] : vector<8x8xf32> to vector<8xf32>
    %215 = vector.shape_cast %214 : vector<8xf32> to vector<1x8xf32>
    %216 = vector.broadcast %165 : f32 to vector<8x1xf32>
    %217 = arith.mulf %211, %216 : vector<8x1xf32>
    %218 = vector.broadcast %168 : f32 to vector<8x1xf32>
    %219 = arith.addf %217, %218 : vector<8x1xf32>
    %220 = vector.broadcast %166 : f32 to vector<1x8xf32>
    %221 = arith.mulf %215, %220 : vector<1x8xf32>
    %222 = vector.broadcast %169 : f32 to vector<1x8xf32>
    %223 = arith.addf %221, %222 : vector<1x8xf32>
    %224 = vector.broadcast %167 : f32 to vector<1x8xf32>
    %225 = arith.mulf %215, %224 : vector<1x8xf32>
    %226 = vector.broadcast %170 : f32 to vector<1x8xf32>
    %227 = arith.addf %225, %226 : vector<1x8xf32>
    %228 = vector.broadcast %219 : vector<8x1xf32> to vector<8x8xf32>
    %229 = vector.broadcast %223 : vector<1x8xf32> to vector<8x8xf32>
    %230 = arith.mulf %228, %229 : vector<8x8xf32>
    %cst_85 = arith.constant dense<0xFF800000> : vector<8xf32>
    %231 = vector.multi_reduction <maximumf>, %230, %cst_85 [1] : vector<8x8xf32> to vector<8xf32>
    %232 = vector.shape_cast %231 : vector<8xf32> to vector<8x1xf32>
    %233 = vector.broadcast %232 : vector<8x1xf32> to vector<8x8xf32>
    %234 = arith.subf %230, %233 : vector<8x8xf32>
    %235 = math.exp %234 : vector<8x8xf32>
    %236 = vector.broadcast %227 : vector<1x8xf32> to vector<8x8xf32>
    %237 = arith.mulf %235, %236 : vector<8x8xf32>
    %cst_86 = arith.constant dense<0.000000e+00> : vector<8xf32>
    %238 = vector.multi_reduction <add>, %237, %cst_86 [1] : vector<8x8xf32> to vector<8xf32>
    %239 = vector.shape_cast %238 : vector<8xf32> to vector<8x1xf32>
    %cst_87 = arith.constant dense<0.000000e+00> : vector<8xf32>
    %240 = vector.multi_reduction <add>, %235, %cst_87 [1] : vector<8x8xf32> to vector<8xf32>
    %241 = vector.shape_cast %240 : vector<8xf32> to vector<8x1xf32>
    %242 = tpu.reciprocal %241 {approx = true} : vector<8x1xf32> -> vector<8x1xf32>
    %243 = arith.mulf %239, %242 : vector<8x1xf32>
    %244 = tpu.concatenate %210, %243 in 0 : vector<8x1xf32>, vector<8x1xf32> -> vector<16x1xf32>
    %245 = vector.broadcast %171 : f32 to vector<16x1xf32>
    %246 = arith.mulf %244, %245 : vector<16x1xf32>
    %247 = vector.broadcast %172 : f32 to vector<16x1xf32>
    %248 = arith.addf %246, %247 : vector<16x1xf32>
    %249 = arith.addf %164, %248 : vector<16x1xf32>
    %250 = arith.subf %249, %249 : vector<16x1xf32>
    %cst_88 = arith.constant 316.227753 : f32
    %251 = arith.mulf %173, %cst_88 : f32
    %252 = vector.broadcast %251 : f32 to vector<16x1xf32>
    %253 = arith.mulf %250, %252 : vector<16x1xf32>
    %254 = vector.broadcast %174 : f32 to vector<16x1xf32>
    %255 = arith.addf %253, %254 : vector<16x1xf32>
    %256 = vector.shape_cast %255 : vector<16x1xf32> to vector<16x1xf32>
    %257 = vector.broadcast %256 : vector<16x1xf32> to vector<16x512xf32>
    %cst_89 = arith.constant 0.000000e+00 : f32
    %258 = vector.broadcast %cst_89 : f32 to vector<16x1xf32>
    %c3_90 = arith.constant 3 : index
    %c0_91 = arith.constant 0 : index
    %259 = vector.load %arg2[%c3_90, %c0_91] : memref<9x2048xf32, #tpu.memory_space<vmem>>, vector<1x512xf32>
    %c4_92 = arith.constant 4 : index
    %c0_93 = arith.constant 0 : index
    %260 = vector.load %arg2[%c4_92, %c0_93] : memref<9x2048xf32, #tpu.memory_space<vmem>>, vector<1x512xf32>
    %c5_94 = arith.constant 5 : index
    %c0_95 = arith.constant 0 : index
    %261 = vector.load %arg2[%c5_94, %c0_95] : memref<9x2048xf32, #tpu.memory_space<vmem>>, vector<1x512xf32>
    %262 = vector.broadcast %259 : vector<1x512xf32> to vector<16x512xf32>
    %263 = arith.mulf %257, %262 : vector<16x512xf32>
    %264 = vector.broadcast %260 : vector<1x512xf32> to vector<16x512xf32>
    %265 = arith.addf %263, %264 : vector<16x512xf32>
    %cst_96 = arith.constant 0.000000e+00 : f32
    %266 = vector.broadcast %cst_96 : f32 to vector<16x512xf32>
    %267 = arith.maximumf %265, %266 : vector<16x512xf32>
    %268 = vector.broadcast %261 : vector<1x512xf32> to vector<16x512xf32>
    %269 = arith.mulf %267, %268 : vector<16x512xf32>
    %cst_97 = arith.constant dense<0.000000e+00> : vector<16xf32>
    %270 = vector.multi_reduction <add>, %269, %cst_97 [1] : vector<16x512xf32> to vector<16xf32>
    %271 = vector.shape_cast %270 : vector<16xf32> to vector<16x1xf32>
    %272 = arith.addf %258, %271 : vector<16x1xf32>
    %c3_98 = arith.constant 3 : index
    %c512_99 = arith.constant 512 : index
    %273 = vector.load %arg2[%c3_98, %c512_99] : memref<9x2048xf32, #tpu.memory_space<vmem>>, vector<1x512xf32>
    %c4_100 = arith.constant 4 : index
    %c512_101 = arith.constant 512 : index
    %274 = vector.load %arg2[%c4_100, %c512_101] : memref<9x2048xf32, #tpu.memory_space<vmem>>, vector<1x512xf32>
    %c5_102 = arith.constant 5 : index
    %c512_103 = arith.constant 512 : index
    %275 = vector.load %arg2[%c5_102, %c512_103] : memref<9x2048xf32, #tpu.memory_space<vmem>>, vector<1x512xf32>
    %276 = vector.broadcast %273 : vector<1x512xf32> to vector<16x512xf32>
    %277 = arith.mulf %257, %276 : vector<16x512xf32>
    %278 = vector.broadcast %274 : vector<1x512xf32> to vector<16x512xf32>
    %279 = arith.addf %277, %278 : vector<16x512xf32>
    %cst_104 = arith.constant 0.000000e+00 : f32
    %280 = vector.broadcast %cst_104 : f32 to vector<16x512xf32>
    %281 = arith.maximumf %279, %280 : vector<16x512xf32>
    %282 = vector.broadcast %275 : vector<1x512xf32> to vector<16x512xf32>
    %283 = arith.mulf %281, %282 : vector<16x512xf32>
    %cst_105 = arith.constant dense<0.000000e+00> : vector<16xf32>
    %284 = vector.multi_reduction <add>, %283, %cst_105 [1] : vector<16x512xf32> to vector<16xf32>
    %285 = vector.shape_cast %284 : vector<16xf32> to vector<16x1xf32>
    %286 = arith.addf %272, %285 : vector<16x1xf32>
    %c3_106 = arith.constant 3 : index
    %c1024_107 = arith.constant 1024 : index
    %287 = vector.load %arg2[%c3_106, %c1024_107] : memref<9x2048xf32, #tpu.memory_space<vmem>>, vector<1x512xf32>
    %c4_108 = arith.constant 4 : index
    %c1024_109 = arith.constant 1024 : index
    %288 = vector.load %arg2[%c4_108, %c1024_109] : memref<9x2048xf32, #tpu.memory_space<vmem>>, vector<1x512xf32>
    %c5_110 = arith.constant 5 : index
    %c1024_111 = arith.constant 1024 : index
    %289 = vector.load %arg2[%c5_110, %c1024_111] : memref<9x2048xf32, #tpu.memory_space<vmem>>, vector<1x512xf32>
    %290 = vector.broadcast %287 : vector<1x512xf32> to vector<16x512xf32>
    %291 = arith.mulf %257, %290 : vector<16x512xf32>
    %292 = vector.broadcast %288 : vector<1x512xf32> to vector<16x512xf32>
    %293 = arith.addf %291, %292 : vector<16x512xf32>
    %cst_112 = arith.constant 0.000000e+00 : f32
    %294 = vector.broadcast %cst_112 : f32 to vector<16x512xf32>
    %295 = arith.maximumf %293, %294 : vector<16x512xf32>
    %296 = vector.broadcast %289 : vector<1x512xf32> to vector<16x512xf32>
    %297 = arith.mulf %295, %296 : vector<16x512xf32>
    %cst_113 = arith.constant dense<0.000000e+00> : vector<16xf32>
    %298 = vector.multi_reduction <add>, %297, %cst_113 [1] : vector<16x512xf32> to vector<16xf32>
    %299 = vector.shape_cast %298 : vector<16xf32> to vector<16x1xf32>
    %300 = arith.addf %286, %299 : vector<16x1xf32>
    %c3_114 = arith.constant 3 : index
    %c1536_115 = arith.constant 1536 : index
    %301 = vector.load %arg2[%c3_114, %c1536_115] : memref<9x2048xf32, #tpu.memory_space<vmem>>, vector<1x512xf32>
    %c4_116 = arith.constant 4 : index
    %c1536_117 = arith.constant 1536 : index
    %302 = vector.load %arg2[%c4_116, %c1536_117] : memref<9x2048xf32, #tpu.memory_space<vmem>>, vector<1x512xf32>
    %c5_118 = arith.constant 5 : index
    %c1536_119 = arith.constant 1536 : index
    %303 = vector.load %arg2[%c5_118, %c1536_119] : memref<9x2048xf32, #tpu.memory_space<vmem>>, vector<1x512xf32>
    %304 = vector.broadcast %301 : vector<1x512xf32> to vector<16x512xf32>
    %305 = arith.mulf %257, %304 : vector<16x512xf32>
    %306 = vector.broadcast %302 : vector<1x512xf32> to vector<16x512xf32>
    %307 = arith.addf %305, %306 : vector<16x512xf32>
    %cst_120 = arith.constant 0.000000e+00 : f32
    %308 = vector.broadcast %cst_120 : f32 to vector<16x512xf32>
    %309 = arith.maximumf %307, %308 : vector<16x512xf32>
    %310 = vector.broadcast %303 : vector<1x512xf32> to vector<16x512xf32>
    %311 = arith.mulf %309, %310 : vector<16x512xf32>
    %cst_121 = arith.constant dense<0.000000e+00> : vector<16xf32>
    %312 = vector.multi_reduction <add>, %311, %cst_121 [1] : vector<16x512xf32> to vector<16xf32>
    %313 = vector.shape_cast %312 : vector<16xf32> to vector<16x1xf32>
    %314 = arith.addf %300, %313 : vector<16x1xf32>
    %315 = vector.broadcast %177 : f32 to vector<16x1xf32>
    %316 = arith.addf %314, %315 : vector<16x1xf32>
    %317 = arith.addf %255, %316 : vector<16x1xf32>
    %318 = arith.subf %317, %317 : vector<16x1xf32>
    %cst_122 = arith.constant 316.227753 : f32
    %319 = arith.mulf %175, %cst_122 : f32
    %320 = vector.broadcast %319 : f32 to vector<16x1xf32>
    %321 = arith.mulf %318, %320 : vector<16x1xf32>
    %322 = vector.broadcast %176 : f32 to vector<16x1xf32>
    %323 = arith.addf %321, %322 : vector<16x1xf32>
    %c2_123 = arith.constant 2 : index
    %c0_124 = arith.constant 0 : index
    %324 = memref.load %arg1[%c2_123, %c0_124] : memref<4x16xf32, #tpu.memory_space<smem>>
    %c2_125 = arith.constant 2 : index
    %c1_126 = arith.constant 1 : index
    %325 = memref.load %arg1[%c2_125, %c1_126] : memref<4x16xf32, #tpu.memory_space<smem>>
    %c2_127 = arith.constant 2 : index
    %c2_128 = arith.constant 2 : index
    %326 = memref.load %arg1[%c2_127, %c2_128] : memref<4x16xf32, #tpu.memory_space<smem>>
    %c2_129 = arith.constant 2 : index
    %c3_130 = arith.constant 3 : index
    %327 = memref.load %arg1[%c2_129, %c3_130] : memref<4x16xf32, #tpu.memory_space<smem>>
    %c2_131 = arith.constant 2 : index
    %c4_132 = arith.constant 4 : index
    %328 = memref.load %arg1[%c2_131, %c4_132] : memref<4x16xf32, #tpu.memory_space<smem>>
    %c2_133 = arith.constant 2 : index
    %c5_134 = arith.constant 5 : index
    %329 = memref.load %arg1[%c2_133, %c5_134] : memref<4x16xf32, #tpu.memory_space<smem>>
    %c2_135 = arith.constant 2 : index
    %c6_136 = arith.constant 6 : index
    %330 = memref.load %arg1[%c2_135, %c6_136] : memref<4x16xf32, #tpu.memory_space<smem>>
    %c2_137 = arith.constant 2 : index
    %c7_138 = arith.constant 7 : index
    %331 = memref.load %arg1[%c2_137, %c7_138] : memref<4x16xf32, #tpu.memory_space<smem>>
    %c2_139 = arith.constant 2 : index
    %c8_140 = arith.constant 8 : index
    %332 = memref.load %arg1[%c2_139, %c8_140] : memref<4x16xf32, #tpu.memory_space<smem>>
    %c2_141 = arith.constant 2 : index
    %c9_142 = arith.constant 9 : index
    %333 = memref.load %arg1[%c2_141, %c9_142] : memref<4x16xf32, #tpu.memory_space<smem>>
    %c2_143 = arith.constant 2 : index
    %c10_144 = arith.constant 10 : index
    %334 = memref.load %arg1[%c2_143, %c10_144] : memref<4x16xf32, #tpu.memory_space<smem>>
    %c2_145 = arith.constant 2 : index
    %c11_146 = arith.constant 11 : index
    %335 = memref.load %arg1[%c2_145, %c11_146] : memref<4x16xf32, #tpu.memory_space<smem>>
    %c2_147 = arith.constant 2 : index
    %c12_148 = arith.constant 12 : index
    %336 = memref.load %arg1[%c2_147, %c12_148] : memref<4x16xf32, #tpu.memory_space<smem>>
    %337 = vector.extract_strided_slice %323 {offsets = [0, 0], sizes = [8, 1], strides = [1, 1]} : vector<16x1xf32> to vector<8x1xf32>
    %338 = vector.broadcast %337 : vector<8x1xf32> to vector<8x8xf32>
    %339 = arith.mulf %338, %5 : vector<8x8xf32>
    %cst_149 = arith.constant dense<0.000000e+00> : vector<8xf32>
    %340 = vector.multi_reduction <add>, %339, %cst_149 [0] : vector<8x8xf32> to vector<8xf32>
    %341 = vector.shape_cast %340 : vector<8xf32> to vector<1x8xf32>
    %342 = vector.broadcast %324 : f32 to vector<8x1xf32>
    %343 = arith.mulf %337, %342 : vector<8x1xf32>
    %344 = vector.broadcast %327 : f32 to vector<8x1xf32>
    %345 = arith.addf %343, %344 : vector<8x1xf32>
    %346 = vector.broadcast %325 : f32 to vector<1x8xf32>
    %347 = arith.mulf %341, %346 : vector<1x8xf32>
    %348 = vector.broadcast %328 : f32 to vector<1x8xf32>
    %349 = arith.addf %347, %348 : vector<1x8xf32>
    %350 = vector.broadcast %326 : f32 to vector<1x8xf32>
    %351 = arith.mulf %341, %350 : vector<1x8xf32>
    %352 = vector.broadcast %329 : f32 to vector<1x8xf32>
    %353 = arith.addf %351, %352 : vector<1x8xf32>
    %354 = vector.broadcast %345 : vector<8x1xf32> to vector<8x8xf32>
    %355 = vector.broadcast %349 : vector<1x8xf32> to vector<8x8xf32>
    %356 = arith.mulf %354, %355 : vector<8x8xf32>
    %cst_150 = arith.constant dense<0xFF800000> : vector<8xf32>
    %357 = vector.multi_reduction <maximumf>, %356, %cst_150 [1] : vector<8x8xf32> to vector<8xf32>
    %358 = vector.shape_cast %357 : vector<8xf32> to vector<8x1xf32>
    %359 = vector.broadcast %358 : vector<8x1xf32> to vector<8x8xf32>
    %360 = arith.subf %356, %359 : vector<8x8xf32>
    %361 = math.exp %360 : vector<8x8xf32>
    %362 = vector.broadcast %353 : vector<1x8xf32> to vector<8x8xf32>
    %363 = arith.mulf %361, %362 : vector<8x8xf32>
    %cst_151 = arith.constant dense<0.000000e+00> : vector<8xf32>
    %364 = vector.multi_reduction <add>, %363, %cst_151 [1] : vector<8x8xf32> to vector<8xf32>
    %365 = vector.shape_cast %364 : vector<8xf32> to vector<8x1xf32>
    %cst_152 = arith.constant dense<0.000000e+00> : vector<8xf32>
    %366 = vector.multi_reduction <add>, %361, %cst_152 [1] : vector<8x8xf32> to vector<8xf32>
    %367 = vector.shape_cast %366 : vector<8xf32> to vector<8x1xf32>
    %368 = tpu.reciprocal %367 {approx = true} : vector<8x1xf32> -> vector<8x1xf32>
    %369 = arith.mulf %365, %368 : vector<8x1xf32>
    %370 = vector.extract_strided_slice %323 {offsets = [8, 0], sizes = [8, 1], strides = [1, 1]} : vector<16x1xf32> to vector<8x1xf32>
    %371 = vector.broadcast %370 : vector<8x1xf32> to vector<8x8xf32>
    %372 = arith.mulf %371, %5 : vector<8x8xf32>
    %cst_153 = arith.constant dense<0.000000e+00> : vector<8xf32>
    %373 = vector.multi_reduction <add>, %372, %cst_153 [0] : vector<8x8xf32> to vector<8xf32>
    %374 = vector.shape_cast %373 : vector<8xf32> to vector<1x8xf32>
    %375 = vector.broadcast %324 : f32 to vector<8x1xf32>
    %376 = arith.mulf %370, %375 : vector<8x1xf32>
    %377 = vector.broadcast %327 : f32 to vector<8x1xf32>
    %378 = arith.addf %376, %377 : vector<8x1xf32>
    %379 = vector.broadcast %325 : f32 to vector<1x8xf32>
    %380 = arith.mulf %374, %379 : vector<1x8xf32>
    %381 = vector.broadcast %328 : f32 to vector<1x8xf32>
    %382 = arith.addf %380, %381 : vector<1x8xf32>
    %383 = vector.broadcast %326 : f32 to vector<1x8xf32>
    %384 = arith.mulf %374, %383 : vector<1x8xf32>
    %385 = vector.broadcast %329 : f32 to vector<1x8xf32>
    %386 = arith.addf %384, %385 : vector<1x8xf32>
    %387 = vector.broadcast %378 : vector<8x1xf32> to vector<8x8xf32>
    %388 = vector.broadcast %382 : vector<1x8xf32> to vector<8x8xf32>
    %389 = arith.mulf %387, %388 : vector<8x8xf32>
    %cst_154 = arith.constant dense<0xFF800000> : vector<8xf32>
    %390 = vector.multi_reduction <maximumf>, %389, %cst_154 [1] : vector<8x8xf32> to vector<8xf32>
    %391 = vector.shape_cast %390 : vector<8xf32> to vector<8x1xf32>
    %392 = vector.broadcast %391 : vector<8x1xf32> to vector<8x8xf32>
    %393 = arith.subf %389, %392 : vector<8x8xf32>
    %394 = math.exp %393 : vector<8x8xf32>
    %395 = vector.broadcast %386 : vector<1x8xf32> to vector<8x8xf32>
    %396 = arith.mulf %394, %395 : vector<8x8xf32>
    %cst_155 = arith.constant dense<0.000000e+00> : vector<8xf32>
    %397 = vector.multi_reduction <add>, %396, %cst_155 [1] : vector<8x8xf32> to vector<8xf32>
    %398 = vector.shape_cast %397 : vector<8xf32> to vector<8x1xf32>
    %cst_156 = arith.constant dense<0.000000e+00> : vector<8xf32>
    %399 = vector.multi_reduction <add>, %394, %cst_156 [1] : vector<8x8xf32> to vector<8xf32>
    %400 = vector.shape_cast %399 : vector<8xf32> to vector<8x1xf32>
    %401 = tpu.reciprocal %400 {approx = true} : vector<8x1xf32> -> vector<8x1xf32>
    %402 = arith.mulf %398, %401 : vector<8x1xf32>
    %403 = tpu.concatenate %369, %402 in 0 : vector<8x1xf32>, vector<8x1xf32> -> vector<16x1xf32>
    %404 = vector.broadcast %330 : f32 to vector<16x1xf32>
    %405 = arith.mulf %403, %404 : vector<16x1xf32>
    %406 = vector.broadcast %331 : f32 to vector<16x1xf32>
    %407 = arith.addf %405, %406 : vector<16x1xf32>
    %408 = arith.addf %323, %407 : vector<16x1xf32>
    %409 = arith.subf %408, %408 : vector<16x1xf32>
    %cst_157 = arith.constant 316.227753 : f32
    %410 = arith.mulf %332, %cst_157 : f32
    %411 = vector.broadcast %410 : f32 to vector<16x1xf32>
    %412 = arith.mulf %409, %411 : vector<16x1xf32>
    %413 = vector.broadcast %333 : f32 to vector<16x1xf32>
    %414 = arith.addf %412, %413 : vector<16x1xf32>
    %415 = vector.shape_cast %414 : vector<16x1xf32> to vector<16x1xf32>
    %416 = vector.broadcast %415 : vector<16x1xf32> to vector<16x512xf32>
    %cst_158 = arith.constant 0.000000e+00 : f32
    %417 = vector.broadcast %cst_158 : f32 to vector<16x1xf32>
    %c6_159 = arith.constant 6 : index
    %c0_160 = arith.constant 0 : index
    %418 = vector.load %arg2[%c6_159, %c0_160] : memref<9x2048xf32, #tpu.memory_space<vmem>>, vector<1x512xf32>
    %c7_161 = arith.constant 7 : index
    %c0_162 = arith.constant 0 : index
    %419 = vector.load %arg2[%c7_161, %c0_162] : memref<9x2048xf32, #tpu.memory_space<vmem>>, vector<1x512xf32>
    %c8_163 = arith.constant 8 : index
    %c0_164 = arith.constant 0 : index
    %420 = vector.load %arg2[%c8_163, %c0_164] : memref<9x2048xf32, #tpu.memory_space<vmem>>, vector<1x512xf32>
    %421 = vector.broadcast %418 : vector<1x512xf32> to vector<16x512xf32>
    %422 = arith.mulf %416, %421 : vector<16x512xf32>
    %423 = vector.broadcast %419 : vector<1x512xf32> to vector<16x512xf32>
    %424 = arith.addf %422, %423 : vector<16x512xf32>
    %cst_165 = arith.constant 0.000000e+00 : f32
    %425 = vector.broadcast %cst_165 : f32 to vector<16x512xf32>
    %426 = arith.maximumf %424, %425 : vector<16x512xf32>
    %427 = vector.broadcast %420 : vector<1x512xf32> to vector<16x512xf32>
    %428 = arith.mulf %426, %427 : vector<16x512xf32>
    %cst_166 = arith.constant dense<0.000000e+00> : vector<16xf32>
    %429 = vector.multi_reduction <add>, %428, %cst_166 [1] : vector<16x512xf32> to vector<16xf32>
    %430 = vector.shape_cast %429 : vector<16xf32> to vector<16x1xf32>
    %431 = arith.addf %417, %430 : vector<16x1xf32>
    %c6_167 = arith.constant 6 : index
    %c512_168 = arith.constant 512 : index
    %432 = vector.load %arg2[%c6_167, %c512_168] : memref<9x2048xf32, #tpu.memory_space<vmem>>, vector<1x512xf32>
    %c7_169 = arith.constant 7 : index
    %c512_170 = arith.constant 512 : index
    %433 = vector.load %arg2[%c7_169, %c512_170] : memref<9x2048xf32, #tpu.memory_space<vmem>>, vector<1x512xf32>
    %c8_171 = arith.constant 8 : index
    %c512_172 = arith.constant 512 : index
    %434 = vector.load %arg2[%c8_171, %c512_172] : memref<9x2048xf32, #tpu.memory_space<vmem>>, vector<1x512xf32>
    %435 = vector.broadcast %432 : vector<1x512xf32> to vector<16x512xf32>
    %436 = arith.mulf %416, %435 : vector<16x512xf32>
    %437 = vector.broadcast %433 : vector<1x512xf32> to vector<16x512xf32>
    %438 = arith.addf %436, %437 : vector<16x512xf32>
    %cst_173 = arith.constant 0.000000e+00 : f32
    %439 = vector.broadcast %cst_173 : f32 to vector<16x512xf32>
    %440 = arith.maximumf %438, %439 : vector<16x512xf32>
    %441 = vector.broadcast %434 : vector<1x512xf32> to vector<16x512xf32>
    %442 = arith.mulf %440, %441 : vector<16x512xf32>
    %cst_174 = arith.constant dense<0.000000e+00> : vector<16xf32>
    %443 = vector.multi_reduction <add>, %442, %cst_174 [1] : vector<16x512xf32> to vector<16xf32>
    %444 = vector.shape_cast %443 : vector<16xf32> to vector<16x1xf32>
    %445 = arith.addf %431, %444 : vector<16x1xf32>
    %c6_175 = arith.constant 6 : index
    %c1024_176 = arith.constant 1024 : index
    %446 = vector.load %arg2[%c6_175, %c1024_176] : memref<9x2048xf32, #tpu.memory_space<vmem>>, vector<1x512xf32>
    %c7_177 = arith.constant 7 : index
    %c1024_178 = arith.constant 1024 : index
    %447 = vector.load %arg2[%c7_177, %c1024_178] : memref<9x2048xf32, #tpu.memory_space<vmem>>, vector<1x512xf32>
    %c8_179 = arith.constant 8 : index
    %c1024_180 = arith.constant 1024 : index
    %448 = vector.load %arg2[%c8_179, %c1024_180] : memref<9x2048xf32, #tpu.memory_space<vmem>>, vector<1x512xf32>
    %449 = vector.broadcast %446 : vector<1x512xf32> to vector<16x512xf32>
    %450 = arith.mulf %416, %449 : vector<16x512xf32>
    %451 = vector.broadcast %447 : vector<1x512xf32> to vector<16x512xf32>
    %452 = arith.addf %450, %451 : vector<16x512xf32>
    %cst_181 = arith.constant 0.000000e+00 : f32
    %453 = vector.broadcast %cst_181 : f32 to vector<16x512xf32>
    %454 = arith.maximumf %452, %453 : vector<16x512xf32>
    %455 = vector.broadcast %448 : vector<1x512xf32> to vector<16x512xf32>
    %456 = arith.mulf %454, %455 : vector<16x512xf32>
    %cst_182 = arith.constant dense<0.000000e+00> : vector<16xf32>
    %457 = vector.multi_reduction <add>, %456, %cst_182 [1] : vector<16x512xf32> to vector<16xf32>
    %458 = vector.shape_cast %457 : vector<16xf32> to vector<16x1xf32>
    %459 = arith.addf %445, %458 : vector<16x1xf32>
    %c6_183 = arith.constant 6 : index
    %c1536_184 = arith.constant 1536 : index
    %460 = vector.load %arg2[%c6_183, %c1536_184] : memref<9x2048xf32, #tpu.memory_space<vmem>>, vector<1x512xf32>
    %c7_185 = arith.constant 7 : index
    %c1536_186 = arith.constant 1536 : index
    %461 = vector.load %arg2[%c7_185, %c1536_186] : memref<9x2048xf32, #tpu.memory_space<vmem>>, vector<1x512xf32>
    %c8_187 = arith.constant 8 : index
    %c1536_188 = arith.constant 1536 : index
    %462 = vector.load %arg2[%c8_187, %c1536_188] : memref<9x2048xf32, #tpu.memory_space<vmem>>, vector<1x512xf32>
    %463 = vector.broadcast %460 : vector<1x512xf32> to vector<16x512xf32>
    %464 = arith.mulf %416, %463 : vector<16x512xf32>
    %465 = vector.broadcast %461 : vector<1x512xf32> to vector<16x512xf32>
    %466 = arith.addf %464, %465 : vector<16x512xf32>
    %cst_189 = arith.constant 0.000000e+00 : f32
    %467 = vector.broadcast %cst_189 : f32 to vector<16x512xf32>
    %468 = arith.maximumf %466, %467 : vector<16x512xf32>
    %469 = vector.broadcast %462 : vector<1x512xf32> to vector<16x512xf32>
    %470 = arith.mulf %468, %469 : vector<16x512xf32>
    %cst_190 = arith.constant dense<0.000000e+00> : vector<16xf32>
    %471 = vector.multi_reduction <add>, %470, %cst_190 [1] : vector<16x512xf32> to vector<16xf32>
    %472 = vector.shape_cast %471 : vector<16xf32> to vector<16x1xf32>
    %473 = arith.addf %459, %472 : vector<16x1xf32>
    %474 = vector.broadcast %336 : f32 to vector<16x1xf32>
    %475 = arith.addf %473, %474 : vector<16x1xf32>
    %476 = arith.addf %414, %475 : vector<16x1xf32>
    %477 = arith.subf %476, %476 : vector<16x1xf32>
    %cst_191 = arith.constant 316.227753 : f32
    %478 = arith.mulf %334, %cst_191 : f32
    %479 = vector.broadcast %478 : f32 to vector<16x1xf32>
    %480 = arith.mulf %477, %479 : vector<16x1xf32>
    %481 = vector.broadcast %335 : f32 to vector<16x1xf32>
    %482 = arith.addf %480, %481 : vector<16x1xf32>
    %c3_192 = arith.constant 3 : index
    %c0_193 = arith.constant 0 : index
    %483 = memref.load %arg1[%c3_192, %c0_193] : memref<4x16xf32, #tpu.memory_space<smem>>
    %c3_194 = arith.constant 3 : index
    %c1_195 = arith.constant 1 : index
    %484 = memref.load %arg1[%c3_194, %c1_195] : memref<4x16xf32, #tpu.memory_space<smem>>
    %485 = vector.extract_strided_slice %482 {offsets = [7, 0], sizes = [1, 1], strides = [1, 1]} : vector<16x1xf32> to vector<1x1xf32>
    %486 = vector.broadcast %483 : f32 to vector<1x1xf32>
    %487 = arith.mulf %485, %486 : vector<1x1xf32>
    %488 = vector.broadcast %484 : f32 to vector<1x1xf32>
    %489 = arith.addf %487, %488 : vector<1x1xf32>
    %c0_196 = arith.constant 0 : index
    %c0_197 = arith.constant 0 : index
    %490 = vector.load %arg3[%c0_196, %c0_197] : memref<2x1xf32, #tpu.memory_space<vmem>>, vector<1x1xf32>
    tpu.vector_store %arg3[%c0_196, %c0_197], %489 {strides = array<i32>} : memref<2x1xf32, #tpu.memory_space<vmem>>, vector<1x1xf32>,
    %491 = vector.extract_strided_slice %482 {offsets = [15, 0], sizes = [1, 1], strides = [1, 1]} : vector<16x1xf32> to vector<1x1xf32>
    %492 = vector.broadcast %483 : f32 to vector<1x1xf32>
    %493 = arith.mulf %491, %492 : vector<1x1xf32>
    %494 = vector.broadcast %484 : f32 to vector<1x1xf32>
    %495 = arith.addf %493, %494 : vector<1x1xf32>
    %c1_198 = arith.constant 1 : index
    %c0_199 = arith.constant 0 : index
    %496 = vector.load %arg3[%c1_198, %c0_199] : memref<2x1xf32, #tpu.memory_space<vmem>>, vector<1x1xf32>
    tpu.vector_store %arg3[%c1_198, %c0_199], %495 {strides = array<i32>} : memref<2x1xf32, #tpu.memory_space<vmem>>, vector<1x1xf32>,
    return
  }
}

</mosaic_0001>

<llo_original>
// kernel: tpu_custom_call.1
$region0: #{tpu_custom_call.1}
  #allocation0 [shape = 'u32[]', space=smem, size = 0x4, offset = 0x4, fixed_abs, tag = 'smem constant byte address 0x4 - core index']
  #allocation1 [shape = 'u32[144,128]{1,0:T(1,128)}', space=vmem, size = 0x12000, scoped, tag = 'internal scratch']
  %s0 = inlined_call_operand.vmem [shape: f32[16,1], index: 0, kind: input, shape index: {}]
  %s1 = inlined_call_operand.vmem [shape: f32[4,16], index: 1, kind: input, shape index: {}]
  %s2 = inlined_call_operand.hbm [shape: f32[9,2048], index: 2, kind: input, shape index: {}]
  %s3 = inlined_call_operand.vmem [shape: f32[2,1], index: 3, kind: output, shape index: {}]
  %s4 = sld [smem:[#allocation0]]
  $region30: #{tpu_custom_call.1} parent=0
    _
  %s6 = ssub.s32 1, %s4
  %s7 = scalar_select 0, %s6, %s4
  $region1: #{tpu_custom_call.1} parent=0
    #allocation2 [shape = 'u8[2048]{0}', space=smem, size = 0x800, scoped, tag = 'input window, operand 1, single buffered']
    #allocation3 [shape = 's32[1]{0}', space=sflag, size = 0x4, scoped, tag = 'scoped memory for tpu_custom_call.1']
    #allocation4 [shape = 's32[1]{0}', space=sflag, size = 0x4, scoped, tag = 'scoped memory for tpu_custom_call.1']
    #allocation5 [shape = 'u8[131072]{0}', space=vmem, size = 0x20000, scoped, tag = 'input window, operand 2, single buffered']
    %8 = vsyncpa [#allocation4], 0
    %9 = vsyncpa [#allocation3], 0
    // Predicated region
    $region2: #{tpu_custom_call.1} parent=1 // pred_check
      _
    $region3: #{tpu_custom_call.1} parent=1 // pred_check_branch
      %11 = sbr.rel (0) target = $region5
    $region4: #{tpu_custom_call.1} parent=1 // pred_region
      _
    $region5: #{tpu_custom_call.1} parent=1 // pred_fallthru
      _
    // Predicated region
    $region6: #{tpu_custom_call.1} parent=1 // pred_check
      _
    $region7: #{tpu_custom_call.1} parent=1 // pred_check_branch
      %13 = sbr.rel (0) target = $region9
    $region8: #{tpu_custom_call.1} parent=1 // pred_region
      %s15 = ssub.s32 64, 64
      %16 = vsyncadd [#allocation4], %s15
      %s18 = sshll.u32 %s1, 4
      %s19 = int_to_ptr.vmem [resolvable:$true] %s18
      %21 = dma.vmem_to_smem %s19, 64, [#allocation2], [#allocation4]
    $region9: #{tpu_custom_call.1} parent=1 // pred_fallthru
      _
    // Predicated region
    $region10: #{tpu_custom_call.1} parent=1 // pred_check
      _
    $region11: #{tpu_custom_call.1} parent=1 // pred_check_branch
      %23 = sbr.rel (0) target = $region13
    $region12: #{tpu_custom_call.1} parent=1 // pred_region
      %s25 = ssub.s32 4096, 4096
      %26 = vsyncadd [#allocation3], %s25
      %s27 = sshll.u32 [#allocation5], 4
      %s28 = int_to_ptr.vmem [resolvable:$true] %s27
      %33 = dma.hbm_to_vmem [thread:$0]  %s2, 4096, %s28, [#allocation3], 2048, 2048, 128
    $region13: #{tpu_custom_call.1} parent=1 // pred_fallthru
      _
    // Predicated region
    $region14: #{tpu_custom_call.1} parent=1 // pred_check
      _
    $region15: #{tpu_custom_call.1} parent=1 // pred_check_branch
      %35 = sbr.rel (0) target = $region17
    $region16: #{tpu_custom_call.1} parent=1 // pred_region
      %36 = dma.done [#allocation4], 64
    $region17: #{tpu_custom_call.1} parent=1 // pred_fallthru
      _
    // Predicated region
    $region18: #{tpu_custom_call.1} parent=1 // pred_check
      _
    $region19: #{tpu_custom_call.1} parent=1 // pred_check_branch
      %38 = sbr.rel (0) target = $region21
    $region20: #{tpu_custom_call.1} parent=1 // pred_region
      %39 = dma.done [#allocation3], 4096
    $region21: #{tpu_custom_call.1} parent=1 // pred_fallthru
      _
    %40 = sfence
    %v41 = vld [vmem:[%s0] sm:$0xff]
    %v42 = vld [vmem:[%s0 + $0x8] sm:$0xff]
    %v43 = vlaneseq
    %v44 = vshrl.u32 %v43, 7
    %v45 = vlaneseq
    %v46 = vand.u32 %v45, 127
    %vm47 = vcmp.eq.s32.totalorder %v44, %v46
    %v48 = vsel %vm47, 1, 0
    %v49 = vcvt.s32.f32 %v48
    %s50 = sld [smem:[#allocation2]]
    %s51 = sld [smem:[#allocation2 + $0x1]]
    %s52 = sld [smem:[#allocation2 + $0x2]]
    %s53 = sld [smem:[#allocation2 + $0x3]]
    %s54 = sld [smem:[#allocation2 + $0x4]]
    %s55 = sld [smem:[#allocation2 + $0x5]]
    %s56 = sld [smem:[#allocation2 + $0x6]]
    %s57 = sld [smem:[#allocation2 + $0x7]]
    %s58 = sld [smem:[#allocation2 + $0x8]]
    %s59 = sld [smem:[#allocation2 + $0x9]]
    %s60 = sld [smem:[#allocation2 + $0xa]]
    %s61 = sld [smem:[#allocation2 + $0xb]]
    %s62 = sld [smem:[#allocation2 + $0xc]]
    %64 = vset.pattern.permute.xlu0 0
    %65 = vperm.xlu0 %64, %v41
    %v66 = vpop.permute.xlu0 %65
    %v68 = vmul.f32 %v66, %v49
    %vm69 = vcmask 64512
    %v70 = vsel %vm69, %v68, 0.0
    %v71 = vrot.slane %v70, 4
    %v72 = vadd.f32 %v70, %v71
    %v73 = vrot.slane %v72, 2
    %v74 = vadd.f32 %v72, %v73
    %v75 = vrot.slane %v74, 1
    %v76 = vadd.f32 %v74, %v75
    %v77 = vstv %s50
    %v78 = vmul.f32 %v41, %v77
    %v79 = vstv %s53
    %v80 = vadd.f32 %v78, %v79
    %v81 = vstv %s51
    %v82 = vmul.f32 %v76, %v81
    %v83 = vstv %s54
    %v84 = vadd.f32 %v82, %v83
    %v85 = vstv %s52
    %v86 = vmul.f32 %v76, %v85
    %v87 = vstv %s55
    %v88 = vadd.f32 %v86, %v87
    %90 = vset.pattern.permute.xlu0 0
    %91 = vperm.xlu0 %90, %v80
    %v92 = vpop.permute.xlu0 %91
    %v94 = vmul.f32 %v92, %v84
    %v95 = vsel %vm69, %v94, -inf
    %96 = vmax.xlane.f32.xlu0 %v95
    %v97 = vpop.xlane.xlu0 %96
    %v98 = vsub.f32 %v94, %v97
    %v99 = vmul.f32 %v98, 1.442695
    %v100 = vpow.pop %v99
    %v101 = vmul.f32 %v100, %v88
    %v102 = vsel %vm69, %v101, 0.0
    %103 = vadd.xlane.f32.xlu0 %v102
    %v104 = vpop.xlane.xlu0 %103
    %v105 = vsel %vm69, %v100, 0.0
    %106 = vadd.xlane.f32.xlu0 %v105
    %v107 = vpop.xlane.xlu0 %106
    %v108 = vrcp.pop %v107
    %v109 = vmul.f32 %v104, %v108
    %111 = vset.pattern.permute.xlu0 0
    %112 = vperm.xlu0 %111, %v42
    %v113 = vpop.permute.xlu0 %112
    %v115 = vmul.f32 %v113, %v49
    %v116 = vsel %vm69, %v115, 0.0
    %v117 = vrot.slane %v116, 4
    %v118 = vadd.f32 %v116, %v117
    %v119 = vrot.slane %v118, 2
    %v120 = vadd.f32 %v118, %v119
    %v121 = vrot.slane %v120, 1
    %v122 = vadd.f32 %v120, %v121
    %v123 = vmul.f32 %v42, %v77
    %v124 = vadd.f32 %v123, %v79
    %v125 = vmul.f32 %v122, %v81
    %v126 = vadd.f32 %v125, %v83
    %v127 = vmul.f32 %v122, %v85
    %v128 = vadd.f32 %v127, %v87
    %130 = vset.pattern.permute.xlu0 0
    %131 = vperm.xlu0 %130, %v124
    %v132 = vpop.permute.xlu0 %131
    %v134 = vmul.f32 %v132, %v126
    %v135 = vsel %vm69, %v134, -inf
    %136 = vmax.xlane.f32.xlu0 %v135
    %v137 = vpop.xlane.xlu0 %136
    %v138 = vsub.f32 %v134, %v137
    %v139 = vmul.f32 %v138, 1.442695
    %v140 = vpow.pop %v139
    %v141 = vmul.f32 %v140, %v128
    %v142 = vsel %vm69, %v141, 0.0
    %143 = vadd.xlane.f32.xlu0 %v142
    %v144 = vpop.xlane.xlu0 %143
    %v145 = vsel %vm69, %v140, 0.0
    %146 = vadd.xlane.f32.xlu0 %v145
    %v147 = vpop.xlane.xlu0 %146
    %v148 = vrcp.pop %v147
    %v149 = vmul.f32 %v144, %v148
    %v150 = vstv %s56
    %v151 = vmul.f32 %v109, %v150
    %v152 = vmul.f32 %v149, %v150
    %v153 = vstv %s57
    %v154 = vadd.f32 %v151, %v153
    %v155 = vadd.f32 %v152, %v153
    %v156 = vadd.f32 %v41, %v154
    %v157 = vadd.f32 %v42, %v155
    %v158 = vsub.f32 %v156, %v156
    %v159 = vsub.f32 %v157, %v157
    %s160 = smul.f32 %s58, 316.22775
    %v161 = vstv %s160
    %v162 = vmul.f32 %v158, %v161
    %v163 = vmul.f32 %v159, %v161
    %v164 = vstv %s59
    %v165 = vadd.f32 %v162, %v164
    %v166 = vadd.f32 %v163, %v164
    %168 = vset.pattern.permute.xlu0 0
    %169 = vperm.xlu0 %168, %v165
    %v170 = vpop.permute.xlu0 %169
    %173 = vset.pattern.permute.xlu0 0
    %174 = vperm.xlu0 %173, %v166
    %v175 = vpop.permute.xlu0 %174
    %v177 = vld [vmem:[#allocation5] ss:$8 sm:$0xf]
    %s178 = scalar_lea.vmem [#allocation5], 1
    %v179 = vld [vmem:[%s178] ss:$8 sm:$0xf]
    %s180 = scalar_lea.vmem [#allocation5], 2
    %v181 = vld [vmem:[%s180] ss:$8 sm:$0xf]
    %v183 = vlaneseq
    %v184 = vshrl.u32 %v183, 7
    %v185 = vsub.s32 0, %v184
    %v186 = vrot.slane %v177, %v185
    %v187 = vlaneseq
    %v188 = vshrl.u32 %v187, 7
    %v189 = vsub.s32 1, %v188
    %v190 = vrot.slane %v177, %v189
    %v191 = vlaneseq
    %v192 = vshrl.u32 %v191, 7
    %v193 = vsub.s32 2, %v192
    %v194 = vrot.slane %v177, %v193
    %v195 = vlaneseq
    %v196 = vshrl.u32 %v195, 7
    %v197 = vsub.s32 3, %v196
    %v198 = vrot.slane %v177, %v197
    %v203 = vmul.f32 %v170, %v186
    %v204 = vmul.f32 %v170, %v190
    %v205 = vmul.f32 %v170, %v194
    %v206 = vmul.f32 %v170, %v198
    %v207 = vmul.f32 %v175, %v186
    %v208 = vmul.f32 %v175, %v190
    %v209 = vmul.f32 %v175, %v194
    %v210 = vmul.f32 %v175, %v198
    %v212 = vlaneseq
    %v213 = vshrl.u32 %v212, 7
    %v214 = vsub.s32 0, %v213
    %v215 = vrot.slane %v179, %v214
    %v216 = vlaneseq
    %v217 = vshrl.u32 %v216, 7
    %v218 = vsub.s32 1, %v217
    %v219 = vrot.slane %v179, %v218
    %v220 = vlaneseq
    %v221 = vshrl.u32 %v220, 7
    %v222 = vsub.s32 2, %v221
    %v223 = vrot.slane %v179, %v222
    %v224 = vlaneseq
    %v225 = vshrl.u32 %v224, 7
    %v226 = vsub.s32 3, %v225
    %v227 = vrot.slane %v179, %v226
    %v232 = vadd.f32 %v203, %v215
    %v233 = vadd.f32 %v204, %v219
    %v234 = vadd.f32 %v205, %v223
    %v235 = vadd.f32 %v206, %v227
    %v236 = vadd.f32 %v207, %v215
    %v237 = vadd.f32 %v208, %v219
    %v238 = vadd.f32 %v209, %v223
    %v239 = vadd.f32 %v210, %v227
    %v240 = vmax.f32 %v232, 0.0
    %v241 = vmax.f32 %v233, 0.0
    %v242 = vmax.f32 %v234, 0.0
    %v243 = vmax.f32 %v235, 0.0
    %v244 = vmax.f32 %v236, 0.0
    %v245 = vmax.f32 %v237, 0.0
    %v246 = vmax.f32 %v238, 0.0
    %v247 = vmax.f32 %v239, 0.0
    %v249 = vlaneseq
    %v250 = vshrl.u32 %v249, 7
    %v251 = vsub.s32 0, %v250
    %v252 = vrot.slane %v181, %v251
    %v253 = vlaneseq
    %v254 = vshrl.u32 %v253, 7
    %v255 = vsub.s32 1, %v254
    %v256 = vrot.slane %v181, %v255
    %v257 = vlaneseq
    %v258 = vshrl.u32 %v257, 7
    %v259 = vsub.s32 2, %v258
    %v260 = vrot.slane %v181, %v259
    %v261 = vlaneseq
    %v262 = vshrl.u32 %v261, 7
    %v263 = vsub.s32 3, %v262
    %v264 = vrot.slane %v181, %v263
    %v269 = vmul.f32 %v240, %v252
    %v270 = vmul.f32 %v241, %v256
    %v271 = vmul.f32 %v242, %v260
    %v272 = vmul.f32 %v243, %v264
    %v273 = vmul.f32 %v244, %v252
    %v274 = vmul.f32 %v245, %v256
    %v275 = vmul.f32 %v246, %v260
    %v276 = vmul.f32 %v247, %v264
    %v277 = vadd.f32 %v269, %v270
    %v278 = vadd.f32 %v277, %v271
    %v279 = vadd.f32 %v278, %v272
    %280 = vadd.xlane.f32.xlu0 %v279
    %v281 = vpop.xlane.xlu0 %280
    %v282 = vadd.f32 %v273, %v274
    %v283 = vadd.f32 %v282, %v275
    %v284 = vadd.f32 %v283, %v276
    %285 = vadd.xlane.f32.xlu0 %v284
    %v286 = vpop.xlane.xlu0 %285
    %v287 = vadd.f32 %v281, 0.0
    %v288 = vadd.f32 %v286, 0.0
    %s289 = scalar_lea.vmem [#allocation5], 32
    %v290 = vld [vmem:[%s289] ss:$8 sm:$0xf]
    %s291 = scalar_lea.vmem [#allocation5], 33
    %v292 = vld [vmem:[%s291] ss:$8 sm:$0xf]
    %s293 = scalar_lea.vmem [#allocation5], 34
    %v294 = vld [vmem:[%s293] ss:$8 sm:$0xf]
    %v296 = vlaneseq
    %v297 = vshrl.u32 %v296, 7
    %v298 = vsub.s32 0, %v297
    %v299 = vrot.slane %v290, %v298
    %v300 = vlaneseq
    %v301 = vshrl.u32 %v300, 7
    %v302 = vsub.s32 1, %v301
    %v303 = vrot.slane %v290, %v302
    %v304 = vlaneseq
    %v305 = vshrl.u32 %v304, 7
    %v306 = vsub.s32 2, %v305
    %v307 = vrot.slane %v290, %v306
    %v308 = vlaneseq
    %v309 = vshrl.u32 %v308, 7
    %v310 = vsub.s32 3, %v309
    %v311 = vrot.slane %v290, %v310
    %v316 = vmul.f32 %v170, %v299
    %v317 = vmul.f32 %v170, %v303
    %v318 = vmul.f32 %v170, %v307
    %v319 = vmul.f32 %v170, %v311
    %v320 = vmul.f32 %v175, %v299
    %v321 = vmul.f32 %v175, %v303
    %v322 = vmul.f32 %v175, %v307
    %v323 = vmul.f32 %v175, %v311
    %v325 = vlaneseq
    %v326 = vshrl.u32 %v325, 7
    %v327 = vsub.s32 0, %v326
    %v328 = vrot.slane %v292, %v327
    %v329 = vlaneseq
    %v330 = vshrl.u32 %v329, 7
    %v331 = vsub.s32 1, %v330
    %v332 = vrot.slane %v292, %v331
    %v333 = vlaneseq
    %v334 = vshrl.u32 %v333, 7
    %v335 = vsub.s32 2, %v334
    %v336 = vrot.slane %v292, %v335
    %v337 = vlaneseq
    %v338 = vshrl.u32 %v337, 7
    %v339 = vsub.s32 3, %v338
    %v340 = vrot.slane %v292, %v339
    %v345 = vadd.f32 %v316, %v328
    %v346 = vadd.f32 %v317, %v332
    %v347 = vadd.f32 %v318, %v336
    %v348 = vadd.f32 %v319, %v340
    %v349 = vadd.f32 %v320, %v328
    %v350 = vadd.f32 %v321, %v332
    %v351 = vadd.f32 %v322, %v336
    %v352 = vadd.f32 %v323, %v340
    %v353 = vmax.f32 %v345, 0.0
    %v354 = vmax.f32 %v346, 0.0
    %v355 = vmax.f32 %v347, 0.0
    %v356 = vmax.f32 %v348, 0.0
    %v357 = vmax.f32 %v349, 0.0
    %v358 = vmax.f32 %v350, 0.0
    %v359 = vmax.f32 %v351, 0.0
    %v360 = vmax.f32 %v352, 0.0
    %v362 = vlaneseq
    %v363 = vshrl.u32 %v362, 7
    %v364 = vsub.s32 0, %v363
    %v365 = vrot.slane %v294, %v364
    %v366 = vlaneseq
    %v367 = vshrl.u32 %v366, 7
    %v368 = vsub.s32 1, %v367
    %v369 = vrot.slane %v294, %v368
    %v370 = vlaneseq
    %v371 = vshrl.u32 %v370, 7
    %v372 = vsub.s32 2, %v371
    %v373 = vrot.slane %v294, %v372
    %v374 = vlaneseq
    %v375 = vshrl.u32 %v374, 7
    %v376 = vsub.s32 3, %v375
    %v377 = vrot.slane %v294, %v376
    %v382 = vmul.f32 %v353, %v365
    %v383 = vmul.f32 %v354, %v369
    %v384 = vmul.f32 %v355, %v373
    %v385 = vmul.f32 %v356, %v377
    %v386 = vmul.f32 %v357, %v365
    %v387 = vmul.f32 %v358, %v369
    %v388 = vmul.f32 %v359, %v373
    %v389 = vmul.f32 %v360, %v377
    %v390 = vadd.f32 %v382, %v383
    %v391 = vadd.f32 %v390, %v384
    %v392 = vadd.f32 %v391, %v385
    %393 = vadd.xlane.f32.xlu0 %v392
    %v394 = vpop.xlane.xlu0 %393
    %v395 = vadd.f32 %v386, %v387
    %v396 = vadd.f32 %v395, %v388
    %v397 = vadd.f32 %v396, %v389
    %398 = vadd.xlane.f32.xlu0 %v397
    %v399 = vpop.xlane.xlu0 %398
    %v400 = vadd.f32 %v287, %v394
    %v401 = vadd.f32 %v288, %v399
    %s402 = scalar_lea.vmem [#allocation5], 64
    %v403 = vld [vmem:[%s402] ss:$8 sm:$0xf]
    %s404 = scalar_lea.vmem [#allocation5], 65
    %v405 = vld [vmem:[%s404] ss:$8 sm:$0xf]
    %s406 = scalar_lea.vmem [#allocation5], 66
    %v407 = vld [vmem:[%s406] ss:$8 sm:$0xf]
    %v409 = vlaneseq
    %v410 = vshrl.u32 %v409, 7
    %v411 = vsub.s32 0, %v410
    %v412 = vrot.slane %v403, %v411
    %v413 = vlaneseq
    %v414 = vshrl.u32 %v413, 7
    %v415 = vsub.s32 1, %v414
    %v416 = vrot.slane %v403, %v415
    %v417 = vlaneseq
    %v418 = vshrl.u32 %v417, 7
    %v419 = vsub.s32 2, %v418
    %v420 = vrot.slane %v403, %v419
    %v421 = vlaneseq
    %v422 = vshrl.u32 %v421, 7
    %v423 = vsub.s32 3, %v422
    %v424 = vrot.slane %v403, %v423
    %v429 = vmul.f32 %v170, %v412
    %v430 = vmul.f32 %v170, %v416
    %v431 = vmul.f32 %v170, %v420
    %v432 = vmul.f32 %v170, %v424
    %v433 = vmul.f32 %v175, %v412
    %v434 = vmul.f32 %v175, %v416
    %v435 = vmul.f32 %v175, %v420
    %v436 = vmul.f32 %v175, %v424
    %v438 = vlaneseq
    %v439 = vshrl.u32 %v438, 7
    %v440 = vsub.s32 0, %v439
    %v441 = vrot.slane %v405, %v440
    %v442 = vlaneseq
    %v443 = vshrl.u32 %v442, 7
    %v444 = vsub.s32 1, %v443
    %v445 = vrot.slane %v405, %v444
    %v446 = vlaneseq
    %v447 = vshrl.u32 %v446, 7
    %v448 = vsub.s32 2, %v447
    %v449 = vrot.slane %v405, %v448
    %v450 = vlaneseq
    %v451 = vshrl.u32 %v450, 7
    %v452 = vsub.s32 3, %v451
    %v453 = vrot.slane %v405, %v452
    %v458 = vadd.f32 %v429, %v441
    %v459 = vadd.f32 %v430, %v445
    %v460 = vadd.f32 %v431, %v449
    %v461 = vadd.f32 %v432, %v453
    %v462 = vadd.f32 %v433, %v441
    %v463 = vadd.f32 %v434, %v445
    %v464 = vadd.f32 %v435, %v449
    %v465 = vadd.f32 %v436, %v453
    %v466 = vmax.f32 %v458, 0.0
    %v467 = vmax.f32 %v459, 0.0
    %v468 = vmax.f32 %v460, 0.0
    %v469 = vmax.f32 %v461, 0.0
    %v470 = vmax.f32 %v462, 0.0
    %v471 = vmax.f32 %v463, 0.0
    %v472 = vmax.f32 %v464, 0.0
    %v473 = vmax.f32 %v465, 0.0
    %v475 = vlaneseq
    %v476 = vshrl.u32 %v475, 7
    %v477 = vsub.s32 0, %v476
    %v478 = vrot.slane %v407, %v477
    %v479 = vlaneseq
    %v480 = vshrl.u32 %v479, 7
    %v481 = vsub.s32 1, %v480
    %v482 = vrot.slane %v407, %v481
    %v483 = vlaneseq
    %v484 = vshrl.u32 %v483, 7
    %v485 = vsub.s32 2, %v484
    %v486 = vrot.slane %v407, %v485
    %v487 = vlaneseq
    %v488 = vshrl.u32 %v487, 7
    %v489 = vsub.s32 3, %v488
    %v490 = vrot.slane %v407, %v489
    %v495 = vmul.f32 %v466, %v478
    %v496 = vmul.f32 %v467, %v482
    %v497 = vmul.f32 %v468, %v486
    %v498 = vmul.f32 %v469, %v490
    %v499 = vmul.f32 %v470, %v478
    %v500 = vmul.f32 %v471, %v482
    %v501 = vmul.f32 %v472, %v486
    %v502 = vmul.f32 %v473, %v490
    %v503 = vadd.f32 %v495, %v496
    %v504 = vadd.f32 %v503, %v497
    %v505 = vadd.f32 %v504, %v498
    %506 = vadd.xlane.f32.xlu0 %v505
    %v507 = vpop.xlane.xlu0 %506
    %v508 = vadd.f32 %v499, %v500
    %v509 = vadd.f32 %v508, %v501
    %v510 = vadd.f32 %v509, %v502
    %511 = vadd.xlane.f32.xlu0 %v510
    %v512 = vpop.xlane.xlu0 %511
    %v513 = vadd.f32 %v400, %v507
    %v514 = vadd.f32 %v401, %v512
    %s515 = scalar_lea.vmem [#allocation5], 96
    %v516 = vld [vmem:[%s515] ss:$8 sm:$0xf]
    %s517 = scalar_lea.vmem [#allocation5], 97
    %v518 = vld [vmem:[%s517] ss:$8 sm:$0xf]
    %s519 = scalar_lea.vmem [#allocation5], 98
    %v520 = vld [vmem:[%s519] ss:$8 sm:$0xf]
    %v522 = vlaneseq
    %v523 = vshrl.u32 %v522, 7
    %v524 = vsub.s32 0, %v523
    %v525 = vrot.slane %v516, %v524
    %v526 = vlaneseq
    %v527 = vshrl.u32 %v526, 7
    %v528 = vsub.s32 1, %v527
    %v529 = vrot.slane %v516, %v528
    %v530 = vlaneseq
    %v531 = vshrl.u32 %v530, 7
    %v532 = vsub.s32 2, %v531
    %v533 = vrot.slane %v516, %v532
    %v534 = vlaneseq
    %v535 = vshrl.u32 %v534, 7
    %v536 = vsub.s32 3, %v535
    %v537 = vrot.slane %v516, %v536
    %v542 = vmul.f32 %v170, %v525
    %v543 = vmul.f32 %v170, %v529
    %v544 = vmul.f32 %v170, %v533
    %v545 = vmul.f32 %v170, %v537
    %v546 = vmul.f32 %v175, %v525
    %v547 = vmul.f32 %v175, %v529
    %v548 = vmul.f32 %v175, %v533
    %v549 = vmul.f32 %v175, %v537
    %v551 = vlaneseq
    %v552 = vshrl.u32 %v551, 7
    %v553 = vsub.s32 0, %v552
    %v554 = vrot.slane %v518, %v553
    %v555 = vlaneseq
    %v556 = vshrl.u32 %v555, 7
    %v557 = vsub.s32 1, %v556
    %v558 = vrot.slane %v518, %v557
    %v559 = vlaneseq
    %v560 = vshrl.u32 %v559, 7
    %v561 = vsub.s32 2, %v560
    %v562 = vrot.slane %v518, %v561
    %v563 = vlaneseq
    %v564 = vshrl.u32 %v563, 7
    %v565 = vsub.s32 3, %v564
    %v566 = vrot.slane %v518, %v565
    %v571 = vadd.f32 %v542, %v554
    %v572 = vadd.f32 %v543, %v558
    %v573 = vadd.f32 %v544, %v562
    %v574 = vadd.f32 %v545, %v566
    %v575 = vadd.f32 %v546, %v554
    %v576 = vadd.f32 %v547, %v558
    %v577 = vadd.f32 %v548, %v562
    %v578 = vadd.f32 %v549, %v566
    %v579 = vmax.f32 %v571, 0.0
    %v580 = vmax.f32 %v572, 0.0
    %v581 = vmax.f32 %v573, 0.0
    %v582 = vmax.f32 %v574, 0.0
    %v583 = vmax.f32 %v575, 0.0
    %v584 = vmax.f32 %v576, 0.0
    %v585 = vmax.f32 %v577, 0.0
    %v586 = vmax.f32 %v578, 0.0
    %v588 = vlaneseq
    %v589 = vshrl.u32 %v588, 7
    %v590 = vsub.s32 0, %v589
    %v591 = vrot.slane %v520, %v590
    %v592 = vlaneseq
    %v593 = vshrl.u32 %v592, 7
    %v594 = vsub.s32 1, %v593
    %v595 = vrot.slane %v520, %v594
    %v596 = vlaneseq
    %v597 = vshrl.u32 %v596, 7
    %v598 = vsub.s32 2, %v597
    %v599 = vrot.slane %v520, %v598
    %v600 = vlaneseq
    %v601 = vshrl.u32 %v600, 7
    %v602 = vsub.s32 3, %v601
    %v603 = vrot.slane %v520, %v602
    %v608 = vmul.f32 %v579, %v591
    %v609 = vmul.f32 %v580, %v595
    %v610 = vmul.f32 %v581, %v599
    %v611 = vmul.f32 %v582, %v603
    %v612 = vmul.f32 %v583, %v591
    %v613 = vmul.f32 %v584, %v595
    %v614 = vmul.f32 %v585, %v599
    %v615 = vmul.f32 %v586, %v603
    %v616 = vadd.f32 %v608, %v609
    %v617 = vadd.f32 %v616, %v610
    %v618 = vadd.f32 %v617, %v611
    %619 = vadd.xlane.f32.xlu0 %v618
    %v620 = vpop.xlane.xlu0 %619
    %v621 = vadd.f32 %v612, %v613
    %v622 = vadd.f32 %v621, %v614
    %v623 = vadd.f32 %v622, %v615
    %624 = vadd.xlane.f32.xlu0 %v623
    %v625 = vpop.xlane.xlu0 %624
    %v626 = vadd.f32 %v513, %v620
    %v627 = vadd.f32 %v514, %v625
    %v628 = vstv %s62
    %v629 = vadd.f32 %v626, %v628
    %v630 = vadd.f32 %v627, %v628
    %v631 = vadd.f32 %v165, %v629
    %v632 = vadd.f32 %v166, %v630
    %v633 = vsub.f32 %v631, %v631
    %v634 = vsub.f32 %v632, %v632
    %s635 = smul.f32 %s60, 316.22775
    %v636 = vstv %s635
    %v637 = vmul.f32 %v633, %v636
    %v638 = vmul.f32 %v634, %v636
    %v639 = vstv %s61
    %v640 = vadd.f32 %v637, %v639
    %v641 = vadd.f32 %v638, %v639
    %s642 = sld [smem:[#allocation2 + $0x80]]
    %s643 = sld [smem:[#allocation2 + $0x81]]
    %s644 = sld [smem:[#allocation2 + $0x82]]
    %s645 = sld [smem:[#allocation2 + $0x83]]
    %s646 = sld [smem:[#allocation2 + $0x84]]
    %s647 = sld [smem:[#allocation2 + $0x85]]
    %s648 = sld [smem:[#allocation2 + $0x86]]
    %s649 = sld [smem:[#allocation2 + $0x87]]
    %s650 = sld [smem:[#allocation2 + $0x88]]
    %s651 = sld [smem:[#allocation2 + $0x89]]
    %s652 = sld [smem:[#allocation2 + $0x8a]]
    %s653 = sld [smem:[#allocation2 + $0x8b]]
    %s654 = sld [smem:[#allocation2 + $0x8c]]
    %656 = vset.pattern.permute.xlu0 0
    %657 = vperm.xlu0 %656, %v640
    %v658 = vpop.permute.xlu0 %657
    %v660 = vmul.f32 %v658, %v49
    %v661 = vsel %vm69, %v660, 0.0
    %v662 = vrot.slane %v661, 4
    %v663 = vadd.f32 %v661, %v662
    %v664 = vrot.slane %v663, 2
    %v665 = vadd.f32 %v663, %v664
    %v666 = vrot.slane %v665, 1
    %v667 = vadd.f32 %v665, %v666
    %v668 = vstv %s642
    %v669 = vmul.f32 %v640, %v668
    %v670 = vstv %s645
    %v671 = vadd.f32 %v669, %v670
    %v672 = vstv %s643
    %v673 = vmul.f32 %v667, %v672
    %v674 = vstv %s646
    %v675 = vadd.f32 %v673, %v674
    %v676 = vstv %s644
    %v677 = vmul.f32 %v667, %v676
    %v678 = vstv %s647
    %v679 = vadd.f32 %v677, %v678
    %681 = vset.pattern.permute.xlu0 0
    %682 = vperm.xlu0 %681, %v671
    %v683 = vpop.permute.xlu0 %682
    %v685 = vmul.f32 %v683, %v675
    %v686 = vsel %vm69, %v685, -inf
    %687 = vmax.xlane.f32.xlu0 %v686
    %v688 = vpop.xlane.xlu0 %687
    %v689 = vsub.f32 %v685, %v688
    %v690 = vmul.f32 %v689, 1.442695
    %v691 = vpow.pop %v690
    %v692 = vmul.f32 %v691, %v679
    %v693 = vsel %vm69, %v692, 0.0
    %694 = vadd.xlane.f32.xlu0 %v693
    %v695 = vpop.xlane.xlu0 %694
    %v696 = vsel %vm69, %v691, 0.0
    %697 = vadd.xlane.f32.xlu0 %v696
    %v698 = vpop.xlane.xlu0 %697
    %v699 = vrcp.pop %v698
    %v700 = vmul.f32 %v695, %v699
    %702 = vset.pattern.permute.xlu0 0
    %703 = vperm.xlu0 %702, %v641
    %v704 = vpop.permute.xlu0 %703
    %v706 = vmul.f32 %v704, %v49
    %v707 = vsel %vm69, %v706, 0.0
    %v708 = vrot.slane %v707, 4
    %v709 = vadd.f32 %v707, %v708
    %v710 = vrot.slane %v709, 2
    %v711 = vadd.f32 %v709, %v710
    %v712 = vrot.slane %v711, 1
    %v713 = vadd.f32 %v711, %v712
    %v714 = vmul.f32 %v641, %v668
    %v715 = vadd.f32 %v714, %v670
    %v716 = vmul.f32 %v713, %v672
    %v717 = vadd.f32 %v716, %v674
    %v718 = vmul.f32 %v713, %v676
    %v719 = vadd.f32 %v718, %v678
    %721 = vset.pattern.permute.xlu0 0
    %722 = vperm.xlu0 %721, %v715
    %v723 = vpop.permute.xlu0 %722
    %v725 = vmul.f32 %v723, %v717
    %v726 = vsel %vm69, %v725, -inf
    %727 = vmax.xlane.f32.xlu0 %v726
    %v728 = vpop.xlane.xlu0 %727
    %v729 = vsub.f32 %v725, %v728
    %v730 = vmul.f32 %v729, 1.442695
    %v731 = vpow.pop %v730
    %v732 = vmul.f32 %v731, %v719
    %v733 = vsel %vm69, %v732, 0.0
    %734 = vadd.xlane.f32.xlu0 %v733
    %v735 = vpop.xlane.xlu0 %734
    %v736 = vsel %vm69, %v731, 0.0
    %737 = vadd.xlane.f32.xlu0 %v736
    %v738 = vpop.xlane.xlu0 %737
    %v739 = vrcp.pop %v738
    %v740 = vmul.f32 %v735, %v739
    %v741 = vstv %s648
    %v742 = vmul.f32 %v700, %v741
    %v743 = vmul.f32 %v740, %v741
    %v744 = vstv %s649
    %v745 = vadd.f32 %v742, %v744
    %v746 = vadd.f32 %v743, %v744
    %v747 = vadd.f32 %v640, %v745
    %v748 = vadd.f32 %v641, %v746
    %v749 = vsub.f32 %v747, %v747
    %v750 = vsub.f32 %v748, %v748
    %s751 = smul.f32 %s650, 316.22775
    %v752 = vstv %s751
    %v753 = vmul.f32 %v749, %v752
    %v754 = vmul.f32 %v750, %v752
    %v755 = vstv %s651
    %v756 = vadd.f32 %v753, %v755
    %v757 = vadd.f32 %v754, %v755
    %759 = vset.pattern.permute.xlu0 0
    %760 = vperm.xlu0 %759, %v756
    %v761 = vpop.permute.xlu0 %760
    %764 = vset.pattern.permute.xlu0 0
    %765 = vperm.xlu0 %764, %v757
    %v766 = vpop.permute.xlu0 %765
    %s768 = scalar_lea.vmem [#allocation5], 3
    %v769 = vld [vmem:[%s768] ss:$8 sm:$0xf]
    %s770 = scalar_lea.vmem [#allocation5], 4
    %v771 = vld [vmem:[%s770] ss:$8 sm:$0xf]
    %s772 = scalar_lea.vmem [#allocation5], 5
    %v773 = vld [vmem:[%s772] ss:$8 sm:$0xf]
    %v775 = vlaneseq
    %v776 = vshrl.u32 %v775, 7
    %v777 = vsub.s32 0, %v776
    %v778 = vrot.slane %v769, %v777
    %v779 = vlaneseq
    %v780 = vshrl.u32 %v779, 7
    %v781 = vsub.s32 1, %v780
    %v782 = vrot.slane %v769, %v781
    %v783 = vlaneseq
    %v784 = vshrl.u32 %v783, 7
    %v785 = vsub.s32 2, %v784
    %v786 = vrot.slane %v769, %v785
    %v787 = vlaneseq
    %v788 = vshrl.u32 %v787, 7
    %v789 = vsub.s32 3, %v788
    %v790 = vrot.slane %v769, %v789
    %v795 = vmul.f32 %v761, %v778
    %v796 = vmul.f32 %v761, %v782
    %v797 = vmul.f32 %v761, %v786
    %v798 = vmul.f32 %v761, %v790
    %v799 = vmul.f32 %v766, %v778
    %v800 = vmul.f32 %v766, %v782
    %v801 = vmul.f32 %v766, %v786
    %v802 = vmul.f32 %v766, %v790
    %v804 = vlaneseq
    %v805 = vshrl.u32 %v804, 7
    %v806 = vsub.s32 0, %v805
    %v807 = vrot.slane %v771, %v806
    %v808 = vlaneseq
    %v809 = vshrl.u32 %v808, 7
    %v810 = vsub.s32 1, %v809
    %v811 = vrot.slane %v771, %v810
    %v812 = vlaneseq
    %v813 = vshrl.u32 %v812, 7
    %v814 = vsub.s32 2, %v813
    %v815 = vrot.slane %v771, %v814
    %v816 = vlaneseq
    %v817 = vshrl.u32 %v816, 7
    %v818 = vsub.s32 3, %v817
    %v819 = vrot.slane %v771, %v818
    %v824 = vadd.f32 %v795, %v807
    %v825 = vadd.f32 %v796, %v811
    %v826 = vadd.f32 %v797, %v815
    %v827 = vadd.f32 %v798, %v819
    %v828 = vadd.f32 %v799, %v807
    %v829 = vadd.f32 %v800, %v811
    %v830 = vadd.f32 %v801, %v815
    %v831 = vadd.f32 %v802, %v819
    %v832 = vmax.f32 %v824, 0.0
    %v833 = vmax.f32 %v825, 0.0
    %v834 = vmax.f32 %v826, 0.0
    %v835 = vmax.f32 %v827, 0.0
    %v836 = vmax.f32 %v828, 0.0
    %v837 = vmax.f32 %v829, 0.0
    %v838 = vmax.f32 %v830, 0.0
    %v839 = vmax.f32 %v831, 0.0
    %v841 = vlaneseq
    %v842 = vshrl.u32 %v841, 7
    %v843 = vsub.s32 0, %v842
    %v844 = vrot.slane %v773, %v843
    %v845 = vlaneseq
    %v846 = vshrl.u32 %v845, 7
    %v847 = vsub.s32 1, %v846
    %v848 = vrot.slane %v773, %v847
    %v849 = vlaneseq
    %v850 = vshrl.u32 %v849, 7
    %v851 = vsub.s32 2, %v850
    %v852 = vrot.slane %v773, %v851
    %v853 = vlaneseq
    %v854 = vshrl.u32 %v853, 7
    %v855 = vsub.s32 3, %v854
    %v856 = vrot.slane %v773, %v855
    %v861 = vmul.f32 %v832, %v844
    %v862 = vmul.f32 %v833, %v848
    %v863 = vmul.f32 %v834, %v852
    %v864 = vmul.f32 %v835, %v856
    %v865 = vmul.f32 %v836, %v844
    %v866 = vmul.f32 %v837, %v848
    %v867 = vmul.f32 %v838, %v852
    %v868 = vmul.f32 %v839, %v856
    %v869 = vadd.f32 %v861, %v862
    %v870 = vadd.f32 %v869, %v863
    %v871 = vadd.f32 %v870, %v864
    %872 = vadd.xlane.f32.xlu0 %v871
    %v873 = vpop.xlane.xlu0 %872
    %v874 = vadd.f32 %v865, %v866
    %v875 = vadd.f32 %v874, %v867
    %v876 = vadd.f32 %v875, %v868
    %877 = vadd.xlane.f32.xlu0 %v876
    %v878 = vpop.xlane.xlu0 %877
    %v879 = vadd.f32 %v873, 0.0
    %v880 = vadd.f32 %v878, 0.0
    %s881 = scalar_lea.vmem [#allocation5], 35
    %v882 = vld [vmem:[%s881] ss:$8 sm:$0xf]
    %s883 = scalar_lea.vmem [#allocation5], 36
    %v884 = vld [vmem:[%s883] ss:$8 sm:$0xf]
    %s885 = scalar_lea.vmem [#allocation5], 37
    %v886 = vld [vmem:[%s885] ss:$8 sm:$0xf]
    %v888 = vlaneseq
    %v889 = vshrl.u32 %v888, 7
    %v890 = vsub.s32 0, %v889
    %v891 = vrot.slane %v882, %v890
    %v892 = vlaneseq
    %v893 = vshrl.u32 %v892, 7
    %v894 = vsub.s32 1, %v893
    %v895 = vrot.slane %v882, %v894
    %v896 = vlaneseq
    %v897 = vshrl.u32 %v896, 7
    %v898 = vsub.s32 2, %v897
    %v899 = vrot.slane %v882, %v898
    %v900 = vlaneseq
    %v901 = vshrl.u32 %v900, 7
    %v902 = vsub.s32 3, %v901
    %v903 = vrot.slane %v882, %v902
    %v908 = vmul.f32 %v761, %v891
    %v909 = vmul.f32 %v761, %v895
    %v910 = vmul.f32 %v761, %v899
    %v911 = vmul.f32 %v761, %v903
    %v912 = vmul.f32 %v766, %v891
    %v913 = vmul.f32 %v766, %v895
    %v914 = vmul.f32 %v766, %v899
    %v915 = vmul.f32 %v766, %v903
    %v917 = vlaneseq
    %v918 = vshrl.u32 %v917, 7
    %v919 = vsub.s32 0, %v918
    %v920 = vrot.slane %v884, %v919
    %v921 = vlaneseq
    %v922 = vshrl.u32 %v921, 7
    %v923 = vsub.s32 1, %v922
    %v924 = vrot.slane %v884, %v923
    %v925 = vlaneseq
    %v926 = vshrl.u32 %v925, 7
    %v927 = vsub.s32 2, %v926
    %v928 = vrot.slane %v884, %v927
    %v929 = vlaneseq
    %v930 = vshrl.u32 %v929, 7
    %v931 = vsub.s32 3, %v930
    %v932 = vrot.slane %v884, %v931
    %v937 = vadd.f32 %v908, %v920
    %v938 = vadd.f32 %v909, %v924
    %v939 = vadd.f32 %v910, %v928
    %v940 = vadd.f32 %v911, %v932
    %v941 = vadd.f32 %v912, %v920
    %v942 = vadd.f32 %v913, %v924
    %v943 = vadd.f32 %v914, %v928
    %v944 = vadd.f32 %v915, %v932
    %v945 = vmax.f32 %v937, 0.0
    %v946 = vmax.f32 %v938, 0.0
    %v947 = vmax.f32 %v939, 0.0
    %v948 = vmax.f32 %v940, 0.0
    %v949 = vmax.f32 %v941, 0.0
    %v950 = vmax.f32 %v942, 0.0
    %v951 = vmax.f32 %v943, 0.0
    %v952 = vmax.f32 %v944, 0.0
    %v954 = vlaneseq
    %v955 = vshrl.u32 %v954, 7
    %v956 = vsub.s32 0, %v955
    %v957 = vrot.slane %v886, %v956
    %v958 = vlaneseq
    %v959 = vshrl.u32 %v958, 7
    %v960 = vsub.s32 1, %v959
    %v961 = vrot.slane %v886, %v960
    %v962 = vlaneseq
    %v963 = vshrl.u32 %v962, 7
    %v964 = vsub.s32 2, %v963
    %v965 = vrot.slane %v886, %v964
    %v966 = vlaneseq
    %v967 = vshrl.u32 %v966, 7
    %v968 = vsub.s32 3, %v967
    %v969 = vrot.slane %v886, %v968
    %v974 = vmul.f32 %v945, %v957
    %v975 = vmul.f32 %v946, %v961
    %v976 = vmul.f32 %v947, %v965
    %v977 = vmul.f32 %v948, %v969
    %v978 = vmul.f32 %v949, %v957
    %v979 = vmul.f32 %v950, %v961
    %v980 = vmul.f32 %v951, %v965
    %v981 = vmul.f32 %v952, %v969
    %v982 = vadd.f32 %v974, %v975
    %v983 = vadd.f32 %v982, %v976
    %v984 = vadd.f32 %v983, %v977
    %985 = vadd.xlane.f32.xlu0 %v984
    %v986 = vpop.xlane.xlu0 %985
    %v987 = vadd.f32 %v978, %v979
    %v988 = vadd.f32 %v987, %v980
    %v989 = vadd.f32 %v988, %v981
    %990 = vadd.xlane.f32.xlu0 %v989
    %v991 = vpop.xlane.xlu0 %990
    %v992 = vadd.f32 %v879, %v986
    %v993 = vadd.f32 %v880, %v991
    %s994 = scalar_lea.vmem [#allocation5], 67
    %v995 = vld [vmem:[%s994] ss:$8 sm:$0xf]
    %s996 = scalar_lea.vmem [#allocation5], 68
    %v997 = vld [vmem:[%s996] ss:$8 sm:$0xf]
    %s998 = scalar_lea.vmem [#allocation5], 69
    %v999 = vld [vmem:[%s998] ss:$8 sm:$0xf]
    %v1001 = vlaneseq
    %v1002 = vshrl.u32 %v1001, 7
    %v1003 = vsub.s32 0, %v1002
    %v1004 = vrot.slane %v995, %v1003
    %v1005 = vlaneseq
    %v1006 = vshrl.u32 %v1005, 7
    %v1007 = vsub.s32 1, %v1006
    %v1008 = vrot.slane %v995, %v1007
    %v1009 = vlaneseq
    %v1010 = vshrl.u32 %v1009, 7
    %v1011 = vsub.s32 2, %v1010
    %v1012 = vrot.slane %v995, %v1011
    %v1013 = vlaneseq
    %v1014 = vshrl.u32 %v1013, 7
    %v1015 = vsub.s32 3, %v1014
    %v1016 = vrot.slane %v995, %v1015
    %v1021 = vmul.f32 %v761, %v1004
    %v1022 = vmul.f32 %v761, %v1008
    %v1023 = vmul.f32 %v761, %v1012
    %v1024 = vmul.f32 %v761, %v1016
    %v1025 = vmul.f32 %v766, %v1004
    %v1026 = vmul.f32 %v766, %v1008
    %v1027 = vmul.f32 %v766, %v1012
    %v1028 = vmul.f32 %v766, %v1016
    %v1030 = vlaneseq
    %v1031 = vshrl.u32 %v1030, 7
    %v1032 = vsub.s32 0, %v1031
    %v1033 = vrot.slane %v997, %v1032
    %v1034 = vlaneseq
    %v1035 = vshrl.u32 %v1034, 7
    %v1036 = vsub.s32 1, %v1035
    %v1037 = vrot.slane %v997, %v1036
    %v1038 = vlaneseq
    %v1039 = vshrl.u32 %v1038, 7
    %v1040 = vsub.s32 2, %v1039
    %v1041 = vrot.slane %v997, %v1040
    %v1042 = vlaneseq
    %v1043 = vshrl.u32 %v1042, 7
    %v1044 = vsub.s32 3, %v1043
    %v1045 = vrot.slane %v997, %v1044
    %v1050 = vadd.f32 %v1021, %v1033
    %v1051 = vadd.f32 %v1022, %v1037
    %v1052 = vadd.f32 %v1023, %v1041
    %v1053 = vadd.f32 %v1024, %v1045
    %v1054 = vadd.f32 %v1025, %v1033
    %v1055 = vadd.f32 %v1026, %v1037
    %v1056 = vadd.f32 %v1027, %v1041
    %v1057 = vadd.f32 %v1028, %v1045
    %v1058 = vmax.f32 %v1050, 0.0
    %v1059 = vmax.f32 %v1051, 0.0
    %v1060 = vmax.f32 %v1052, 0.0
    %v1061 = vmax.f32 %v1053, 0.0
    %v1062 = vmax.f32 %v1054, 0.0
    %v1063 = vmax.f32 %v1055, 0.0
    %v1064 = vmax.f32 %v1056, 0.0
    %v1065 = vmax.f32 %v1057, 0.0
    %v1067 = vlaneseq
    %v1068 = vshrl.u32 %v1067, 7
    %v1069 = vsub.s32 0, %v1068
    %v1070 = vrot.slane %v999, %v1069
    %v1071 = vlaneseq
    %v1072 = vshrl.u32 %v1071, 7
    %v1073 = vsub.s32 1, %v1072
    %v1074 = vrot.slane %v999, %v1073
    %v1075 = vlaneseq
    %v1076 = vshrl.u32 %v1075, 7
    %v1077 = vsub.s32 2, %v1076
    %v1078 = vrot.slane %v999, %v1077
    %v1079 = vlaneseq
    %v1080 = vshrl.u32 %v1079, 7
    %v1081 = vsub.s32 3, %v1080
    %v1082 = vrot.slane %v999, %v1081
    %v1087 = vmul.f32 %v1058, %v1070
    %v1088 = vmul.f32 %v1059, %v1074
    %v1089 = vmul.f32 %v1060, %v1078
    %v1090 = vmul.f32 %v1061, %v1082
    %v1091 = vmul.f32 %v1062, %v1070
    %v1092 = vmul.f32 %v1063, %v1074
    %v1093 = vmul.f32 %v1064, %v1078
    %v1094 = vmul.f32 %v1065, %v1082
    %v1095 = vadd.f32 %v1087, %v1088
    %v1096 = vadd.f32 %v1095, %v1089
    %v1097 = vadd.f32 %v1096, %v1090
    %1098 = vadd.xlane.f32.xlu0 %v1097
    %v1099 = vpop.xlane.xlu0 %1098
    %v1100 = vadd.f32 %v1091, %v1092
    %v1101 = vadd.f32 %v1100, %v1093
    %v1102 = vadd.f32 %v1101, %v1094
    %1103 = vadd.xlane.f32.xlu0 %v1102
    %v1104 = vpop.xlane.xlu0 %1103
    %v1105 = vadd.f32 %v992, %v1099
    %v1106 = vadd.f32 %v993, %v1104
    %s1107 = scalar_lea.vmem [#allocation5], 99
    %v1108 = vld [vmem:[%s1107] ss:$8 sm:$0xf]
    %s1109 = scalar_lea.vmem [#allocation5], 100
    %v1110 = vld [vmem:[%s1109] ss:$8 sm:$0xf]
    %s1111 = scalar_lea.vmem [#allocation5], 101
    %v1112 = vld [vmem:[%s1111] ss:$8 sm:$0xf]
    %v1114 = vlaneseq
    %v1115 = vshrl.u32 %v1114, 7
    %v1116 = vsub.s32 0, %v1115
    %v1117 = vrot.slane %v1108, %v1116
    %v1118 = vlaneseq
    %v1119 = vshrl.u32 %v1118, 7
    %v1120 = vsub.s32 1, %v1119
    %v1121 = vrot.slane %v1108, %v1120
    %v1122 = vlaneseq
    %v1123 = vshrl.u32 %v1122, 7
    %v1124 = vsub.s32 2, %v1123
    %v1125 = vrot.slane %v1108, %v1124
    %v1126 = vlaneseq
    %v1127 = vshrl.u32 %v1126, 7
    %v1128 = vsub.s32 3, %v1127
    %v1129 = vrot.slane %v1108, %v1128
    %v1134 = vmul.f32 %v761, %v1117
    %v1135 = vmul.f32 %v761, %v1121
    %v1136 = vmul.f32 %v761, %v1125
    %v1137 = vmul.f32 %v761, %v1129
    %v1138 = vmul.f32 %v766, %v1117
    %v1139 = vmul.f32 %v766, %v1121
    %v1140 = vmul.f32 %v766, %v1125
    %v1141 = vmul.f32 %v766, %v1129
    %v1143 = vlaneseq
    %v1144 = vshrl.u32 %v1143, 7
    %v1145 = vsub.s32 0, %v1144
    %v1146 = vrot.slane %v1110, %v1145
    %v1147 = vlaneseq
    %v1148 = vshrl.u32 %v1147, 7
    %v1149 = vsub.s32 1, %v1148
    %v1150 = vrot.slane %v1110, %v1149
    %v1151 = vlaneseq
    %v1152 = vshrl.u32 %v1151, 7
    %v1153 = vsub.s32 2, %v1152
    %v1154 = vrot.slane %v1110, %v1153
    %v1155 = vlaneseq
    %v1156 = vshrl.u32 %v1155, 7
    %v1157 = vsub.s32 3, %v1156
    %v1158 = vrot.slane %v1110, %v1157
    %v1163 = vadd.f32 %v1134, %v1146
    %v1164 = vadd.f32 %v1135, %v1150
    %v1165 = vadd.f32 %v1136, %v1154
    %v1166 = vadd.f32 %v1137, %v1158
    %v1167 = vadd.f32 %v1138, %v1146
    %v1168 = vadd.f32 %v1139, %v1150
    %v1169 = vadd.f32 %v1140, %v1154
    %v1170 = vadd.f32 %v1141, %v1158
    %v1171 = vmax.f32 %v1163, 0.0
    %v1172 = vmax.f32 %v1164, 0.0
    %v1173 = vmax.f32 %v1165, 0.0
    %v1174 = vmax.f32 %v1166, 0.0
    %v1175 = vmax.f32 %v1167, 0.0
    %v1176 = vmax.f32 %v1168, 0.0
    %v1177 = vmax.f32 %v1169, 0.0
    %v1178 = vmax.f32 %v1170, 0.0
    %v1180 = vlaneseq
    %v1181 = vshrl.u32 %v1180, 7
    %v1182 = vsub.s32 0, %v1181
    %v1183 = vrot.slane %v1112, %v1182
    %v1184 = vlaneseq
    %v1185 = vshrl.u32 %v1184, 7
    %v1186 = vsub.s32 1, %v1185
    %v1187 = vrot.slane %v1112, %v1186
    %v1188 = vlaneseq
    %v1189 = vshrl.u32 %v1188, 7
    %v1190 = vsub.s32 2, %v1189
    %v1191 = vrot.slane %v1112, %v1190
    %v1192 = vlaneseq
    %v1193 = vshrl.u32 %v1192, 7
    %v1194 = vsub.s32 3, %v1193
    %v1195 = vrot.slane %v1112, %v1194
    %v1200 = vmul.f32 %v1171, %v1183
    %v1201 = vmul.f32 %v1172, %v1187
    %v1202 = vmul.f32 %v1173, %v1191
    %v1203 = vmul.f32 %v1174, %v1195
    %v1204 = vmul.f32 %v1175, %v1183
    %v1205 = vmul.f32 %v1176, %v1187
    %v1206 = vmul.f32 %v1177, %v1191
    %v1207 = vmul.f32 %v1178, %v1195
    %v1208 = vadd.f32 %v1200, %v1201
    %v1209 = vadd.f32 %v1208, %v1202
    %v1210 = vadd.f32 %v1209, %v1203
    %1211 = vadd.xlane.f32.xlu0 %v1210
    %v1212 = vpop.xlane.xlu0 %1211
    %v1213 = vadd.f32 %v1204, %v1205
    %v1214 = vadd.f32 %v1213, %v1206
    %v1215 = vadd.f32 %v1214, %v1207
    %1216 = vadd.xlane.f32.xlu0 %v1215
    %v1217 = vpop.xlane.xlu0 %1216
    %v1218 = vadd.f32 %v1105, %v1212
    %v1219 = vadd.f32 %v1106, %v1217
    %v1220 = vstv %s654
    %v1221 = vadd.f32 %v1218, %v1220
    %v1222 = vadd.f32 %v1219, %v1220
    %v1223 = vadd.f32 %v756, %v1221
    %v1224 = vadd.f32 %v757, %v1222
    %v1225 = vsub.f32 %v1223, %v1223
    %v1226 = vsub.f32 %v1224, %v1224
    %s1227 = smul.f32 %s652, 316.22775
    %v1228 = vstv %s1227
    %v1229 = vmul.f32 %v1225, %v1228
    %v1230 = vmul.f32 %v1226, %v1228
    %v1231 = vstv %s653
    %v1232 = vadd.f32 %v1229, %v1231
    %v1233 = vadd.f32 %v1230, %v1231
    %s1234 = sld [smem:[#allocation2 + $0x100]]
    %s1235 = sld [smem:[#allocation2 + $0x101]]
    %s1236 = sld [smem:[#allocation2 + $0x102]]
    %s1237 = sld [smem:[#allocation2 + $0x103]]
    %s1238 = sld [smem:[#allocation2 + $0x104]]
    %s1239 = sld [smem:[#allocation2 + $0x105]]
    %s1240 = sld [smem:[#allocation2 + $0x106]]
    %s1241 = sld [smem:[#allocation2 + $0x107]]
    %s1242 = sld [smem:[#allocation2 + $0x108]]
    %s1243 = sld [smem:[#allocation2 + $0x109]]
    %s1244 = sld [smem:[#allocation2 + $0x10a]]
    %s1245 = sld [smem:[#allocation2 + $0x10b]]
    %s1246 = sld [smem:[#allocation2 + $0x10c]]
    %1248 = vset.pattern.permute.xlu0 0
    %1249 = vperm.xlu0 %1248, %v1232
    %v1250 = vpop.permute.xlu0 %1249
    %v1252 = vmul.f32 %v1250, %v49
    %v1253 = vsel %vm69, %v1252, 0.0
    %v1254 = vrot.slane %v1253, 4
    %v1255 = vadd.f32 %v1253, %v1254
    %v1256 = vrot.slane %v1255, 2
    %v1257 = vadd.f32 %v1255, %v1256
    %v1258 = vrot.slane %v1257, 1
    %v1259 = vadd.f32 %v1257, %v1258
    %v1260 = vstv %s1234
    %v1261 = vmul.f32 %v1232, %v1260
    %v1262 = vstv %s1237
    %v1263 = vadd.f32 %v1261, %v1262
    %v1264 = vstv %s1235
    %v1265 = vmul.f32 %v1259, %v1264
    %v1266 = vstv %s1238
    %v1267 = vadd.f32 %v1265, %v1266
    %v1268 = vstv %s1236
    %v1269 = vmul.f32 %v1259, %v1268
    %v1270 = vstv %s1239
    %v1271 = vadd.f32 %v1269, %v1270
    %1273 = vset.pattern.permute.xlu0 0
    %1274 = vperm.xlu0 %1273, %v1263
    %v1275 = vpop.permute.xlu0 %1274
    %v1277 = vmul.f32 %v1275, %v1267
    %v1278 = vsel %vm69, %v1277, -inf
    %1279 = vmax.xlane.f32.xlu0 %v1278
    %v1280 = vpop.xlane.xlu0 %1279
    %v1281 = vsub.f32 %v1277, %v1280
    %v1282 = vmul.f32 %v1281, 1.442695
    %v1283 = vpow.pop %v1282
    %v1284 = vmul.f32 %v1283, %v1271
    %v1285 = vsel %vm69, %v1284, 0.0
    %1286 = vadd.xlane.f32.xlu0 %v1285
    %v1287 = vpop.xlane.xlu0 %1286
    %v1288 = vsel %vm69, %v1283, 0.0
    %1289 = vadd.xlane.f32.xlu0 %v1288
    %v1290 = vpop.xlane.xlu0 %1289
    %v1291 = vrcp.pop %v1290
    %v1292 = vmul.f32 %v1287, %v1291
    %1294 = vset.pattern.permute.xlu0 0
    %1295 = vperm.xlu0 %1294, %v1233
    %v1296 = vpop.permute.xlu0 %1295
    %v1298 = vmul.f32 %v1296, %v49
    %v1299 = vsel %vm69, %v1298, 0.0
    %v1300 = vrot.slane %v1299, 4
    %v1301 = vadd.f32 %v1299, %v1300
    %v1302 = vrot.slane %v1301, 2
    %v1303 = vadd.f32 %v1301, %v1302
    %v1304 = vrot.slane %v1303, 1
    %v1305 = vadd.f32 %v1303, %v1304
    %v1306 = vmul.f32 %v1233, %v1260
    %v1307 = vadd.f32 %v1306, %v1262
    %v1308 = vmul.f32 %v1305, %v1264
    %v1309 = vadd.f32 %v1308, %v1266
    %v1310 = vmul.f32 %v1305, %v1268
    %v1311 = vadd.f32 %v1310, %v1270
    %1313 = vset.pattern.permute.xlu0 0
    %1314 = vperm.xlu0 %1313, %v1307
    %v1315 = vpop.permute.xlu0 %1314
    %v1317 = vmul.f32 %v1315, %v1309
    %v1318 = vsel %vm69, %v1317, -inf
    %1319 = vmax.xlane.f32.xlu0 %v1318
    %v1320 = vpop.xlane.xlu0 %1319
    %v1321 = vsub.f32 %v1317, %v1320
    %v1322 = vmul.f32 %v1321, 1.442695
    %v1323 = vpow.pop %v1322
    %v1324 = vmul.f32 %v1323, %v1311
    %v1325 = vsel %vm69, %v1324, 0.0
    %1326 = vadd.xlane.f32.xlu0 %v1325
    %v1327 = vpop.xlane.xlu0 %1326
    %v1328 = vsel %vm69, %v1323, 0.0
    %1329 = vadd.xlane.f32.xlu0 %v1328
    %v1330 = vpop.xlane.xlu0 %1329
    %v1331 = vrcp.pop %v1330
    %v1332 = vmul.f32 %v1327, %v1331
    %v1333 = vstv %s1240
    %v1334 = vmul.f32 %v1292, %v1333
    %v1335 = vmul.f32 %v1332, %v1333
    %v1336 = vstv %s1241
    %v1337 = vadd.f32 %v1334, %v1336
    %v1338 = vadd.f32 %v1335, %v1336
    %v1339 = vadd.f32 %v1232, %v1337
    %v1340 = vadd.f32 %v1233, %v1338
    %v1341 = vsub.f32 %v1339, %v1339
    %v1342 = vsub.f32 %v1340, %v1340
    %s1343 = smul.f32 %s1242, 316.22775
    %v1344 = vstv %s1343
    %v1345 = vmul.f32 %v1341, %v1344
    %v1346 = vmul.f32 %v1342, %v1344
    %v1347 = vstv %s1243
    %v1348 = vadd.f32 %v1345, %v1347
    %v1349 = vadd.f32 %v1346, %v1347
    %1351 = vset.pattern.permute.xlu0 0
    %1352 = vperm.xlu0 %1351, %v1348
    %v1353 = vpop.permute.xlu0 %1352
    %1356 = vset.pattern.permute.xlu0 0
    %1357 = vperm.xlu0 %1356, %v1349
    %v1358 = vpop.permute.xlu0 %1357
    %s1360 = scalar_lea.vmem [#allocation5], 6
    %v1361 = vld [vmem:[%s1360] ss:$8 sm:$0xf]
    %s1362 = scalar_lea.vmem [#allocation5], 7
    %v1363 = vld [vmem:[%s1362] ss:$8 sm:$0xf]
    %s1364 = scalar_lea.vmem [#allocation5], 128
    %v1365 = vld [vmem:[%s1364] ss:$8 sm:$0xf]
    %v1367 = vlaneseq
    %v1368 = vshrl.u32 %v1367, 7
    %v1369 = vsub.s32 0, %v1368
    %v1370 = vrot.slane %v1361, %v1369
    %v1371 = vlaneseq
    %v1372 = vshrl.u32 %v1371, 7
    %v1373 = vsub.s32 1, %v1372
    %v1374 = vrot.slane %v1361, %v1373
    %v1375 = vlaneseq
    %v1376 = vshrl.u32 %v1375, 7
    %v1377 = vsub.s32 2, %v1376
    %v1378 = vrot.slane %v1361, %v1377
    %v1379 = vlaneseq
    %v1380 = vshrl.u32 %v1379, 7
    %v1381 = vsub.s32 3, %v1380
    %v1382 = vrot.slane %v1361, %v1381
    %v1387 = vmul.f32 %v1353, %v1370
    %v1388 = vmul.f32 %v1353, %v1374
    %v1389 = vmul.f32 %v1353, %v1378
    %v1390 = vmul.f32 %v1353, %v1382
    %v1391 = vmul.f32 %v1358, %v1370
    %v1392 = vmul.f32 %v1358, %v1374
    %v1393 = vmul.f32 %v1358, %v1378
    %v1394 = vmul.f32 %v1358, %v1382
    %v1396 = vlaneseq
    %v1397 = vshrl.u32 %v1396, 7
    %v1398 = vsub.s32 0, %v1397
    %v1399 = vrot.slane %v1363, %v1398
    %v1400 = vlaneseq
    %v1401 = vshrl.u32 %v1400, 7
    %v1402 = vsub.s32 1, %v1401
    %v1403 = vrot.slane %v1363, %v1402
    %v1404 = vlaneseq
    %v1405 = vshrl.u32 %v1404, 7
    %v1406 = vsub.s32 2, %v1405
    %v1407 = vrot.slane %v1363, %v1406
    %v1408 = vlaneseq
    %v1409 = vshrl.u32 %v1408, 7
    %v1410 = vsub.s32 3, %v1409
    %v1411 = vrot.slane %v1363, %v1410
    %v1416 = vadd.f32 %v1387, %v1399
    %v1417 = vadd.f32 %v1388, %v1403
    %v1418 = vadd.f32 %v1389, %v1407
    %v1419 = vadd.f32 %v1390, %v1411
    %v1420 = vadd.f32 %v1391, %v1399
    %v1421 = vadd.f32 %v1392, %v1403
    %v1422 = vadd.f32 %v1393, %v1407
    %v1423 = vadd.f32 %v1394, %v1411
    %v1424 = vmax.f32 %v1416, 0.0
    %v1425 = vmax.f32 %v1417, 0.0
    %v1426 = vmax.f32 %v1418, 0.0
    %v1427 = vmax.f32 %v1419, 0.0
    %v1428 = vmax.f32 %v1420, 0.0
    %v1429 = vmax.f32 %v1421, 0.0
    %v1430 = vmax.f32 %v1422, 0.0
    %v1431 = vmax.f32 %v1423, 0.0
    %v1433 = vlaneseq
    %v1434 = vshrl.u32 %v1433, 7
    %v1435 = vsub.s32 0, %v1434
    %v1436 = vrot.slane %v1365, %v1435
    %v1437 = vlaneseq
    %v1438 = vshrl.u32 %v1437, 7
    %v1439 = vsub.s32 1, %v1438
    %v1440 = vrot.slane %v1365, %v1439
    %v1441 = vlaneseq
    %v1442 = vshrl.u32 %v1441, 7
    %v1443 = vsub.s32 2, %v1442
    %v1444 = vrot.slane %v1365, %v1443
    %v1445 = vlaneseq
    %v1446 = vshrl.u32 %v1445, 7
    %v1447 = vsub.s32 3, %v1446
    %v1448 = vrot.slane %v1365, %v1447
    %v1453 = vmul.f32 %v1424, %v1436
    %v1454 = vmul.f32 %v1425, %v1440
    %v1455 = vmul.f32 %v1426, %v1444
    %v1456 = vmul.f32 %v1427, %v1448
    %v1457 = vmul.f32 %v1428, %v1436
    %v1458 = vmul.f32 %v1429, %v1440
    %v1459 = vmul.f32 %v1430, %v1444
    %v1460 = vmul.f32 %v1431, %v1448
    %v1461 = vadd.f32 %v1453, %v1454
    %v1462 = vadd.f32 %v1461, %v1455
    %v1463 = vadd.f32 %v1462, %v1456
    %1464 = vadd.xlane.f32.xlu0 %v1463
    %v1465 = vpop.xlane.xlu0 %1464
    %v1466 = vadd.f32 %v1457, %v1458
    %v1467 = vadd.f32 %v1466, %v1459
    %v1468 = vadd.f32 %v1467, %v1460
    %1469 = vadd.xlane.f32.xlu0 %v1468
    %v1470 = vpop.xlane.xlu0 %1469
    %v1471 = vadd.f32 %v1465, 0.0
    %v1472 = vadd.f32 %v1470, 0.0
    %s1473 = scalar_lea.vmem [#allocation5], 38
    %v1474 = vld [vmem:[%s1473] ss:$8 sm:$0xf]
    %s1475 = scalar_lea.vmem [#allocation5], 39
    %v1476 = vld [vmem:[%s1475] ss:$8 sm:$0xf]
    %s1477 = scalar_lea.vmem [#allocation5], 160
    %v1478 = vld [vmem:[%s1477] ss:$8 sm:$0xf]
    %v1480 = vlaneseq
    %v1481 = vshrl.u32 %v1480, 7
    %v1482 = vsub.s32 0, %v1481
    %v1483 = vrot.slane %v1474, %v1482
    %v1484 = vlaneseq
    %v1485 = vshrl.u32 %v1484, 7
    %v1486 = vsub.s32 1, %v1485
    %v1487 = vrot.slane %v1474, %v1486
    %v1488 = vlaneseq
    %v1489 = vshrl.u32 %v1488, 7
    %v1490 = vsub.s32 2, %v1489
    %v1491 = vrot.slane %v1474, %v1490
    %v1492 = vlaneseq
    %v1493 = vshrl.u32 %v1492, 7
    %v1494 = vsub.s32 3, %v1493
    %v1495 = vrot.slane %v1474, %v1494
    %v1500 = vmul.f32 %v1353, %v1483
    %v1501 = vmul.f32 %v1353, %v1487
    %v1502 = vmul.f32 %v1353, %v1491
    %v1503 = vmul.f32 %v1353, %v1495
    %v1504 = vmul.f32 %v1358, %v1483
    %v1505 = vmul.f32 %v1358, %v1487
    %v1506 = vmul.f32 %v1358, %v1491
    %v1507 = vmul.f32 %v1358, %v1495
    %v1509 = vlaneseq
    %v1510 = vshrl.u32 %v1509, 7
    %v1511 = vsub.s32 0, %v1510
    %v1512 = vrot.slane %v1476, %v1511
    %v1513 = vlaneseq
    %v1514 = vshrl.u32 %v1513, 7
    %v1515 = vsub.s32 1, %v1514
    %v1516 = vrot.slane %v1476, %v1515
    %v1517 = vlaneseq
    %v1518 = vshrl.u32 %v1517, 7
    %v1519 = vsub.s32 2, %v1518
    %v1520 = vrot.slane %v1476, %v1519
    %v1521 = vlaneseq
    %v1522 = vshrl.u32 %v1521, 7
    %v1523 = vsub.s32 3, %v1522
    %v1524 = vrot.slane %v1476, %v1523
    %v1529 = vadd.f32 %v1500, %v1512
    %v1530 = vadd.f32 %v1501, %v1516
    %v1531 = vadd.f32 %v1502, %v1520
    %v1532 = vadd.f32 %v1503, %v1524
    %v1533 = vadd.f32 %v1504, %v1512
    %v1534 = vadd.f32 %v1505, %v1516
    %v1535 = vadd.f32 %v1506, %v1520
    %v1536 = vadd.f32 %v1507, %v1524
    %v1537 = vmax.f32 %v1529, 0.0
    %v1538 = vmax.f32 %v1530, 0.0
    %v1539 = vmax.f32 %v1531, 0.0
    %v1540 = vmax.f32 %v1532, 0.0
    %v1541 = vmax.f32 %v1533, 0.0
    %v1542 = vmax.f32 %v1534, 0.0
    %v1543 = vmax.f32 %v1535, 0.0
    %v1544 = vmax.f32 %v1536, 0.0
    %v1546 = vlaneseq
    %v1547 = vshrl.u32 %v1546, 7
    %v1548 = vsub.s32 0, %v1547
    %v1549 = vrot.slane %v1478, %v1548
    %v1550 = vlaneseq
    %v1551 = vshrl.u32 %v1550, 7
    %v1552 = vsub.s32 1, %v1551
    %v1553 = vrot.slane %v1478, %v1552
    %v1554 = vlaneseq
    %v1555 = vshrl.u32 %v1554, 7
    %v1556 = vsub.s32 2, %v1555
    %v1557 = vrot.slane %v1478, %v1556
    %v1558 = vlaneseq
    %v1559 = vshrl.u32 %v1558, 7
    %v1560 = vsub.s32 3, %v1559
    %v1561 = vrot.slane %v1478, %v1560
    %v1566 = vmul.f32 %v1537, %v1549
    %v1567 = vmul.f32 %v1538, %v1553
    %v1568 = vmul.f32 %v1539, %v1557
    %v1569 = vmul.f32 %v1540, %v1561
    %v1570 = vmul.f32 %v1541, %v1549
    %v1571 = vmul.f32 %v1542, %v1553
    %v1572 = vmul.f32 %v1543, %v1557
    %v1573 = vmul.f32 %v1544, %v1561
    %v1574 = vadd.f32 %v1566, %v1567
    %v1575 = vadd.f32 %v1574, %v1568
    %v1576 = vadd.f32 %v1575, %v1569
    %1577 = vadd.xlane.f32.xlu0 %v1576
    %v1578 = vpop.xlane.xlu0 %1577
    %v1579 = vadd.f32 %v1570, %v1571
    %v1580 = vadd.f32 %v1579, %v1572
    %v1581 = vadd.f32 %v1580, %v1573
    %1582 = vadd.xlane.f32.xlu0 %v1581
    %v1583 = vpop.xlane.xlu0 %1582
    %v1584 = vadd.f32 %v1471, %v1578
    %v1585 = vadd.f32 %v1472, %v1583
    %s1586 = scalar_lea.vmem [#allocation5], 70
    %v1587 = vld [vmem:[%s1586] ss:$8 sm:$0xf]
    %s1588 = scalar_lea.vmem [#allocation5], 71
    %v1589 = vld [vmem:[%s1588] ss:$8 sm:$0xf]
    %s1590 = scalar_lea.vmem [#allocation5], 192
    %v1591 = vld [vmem:[%s1590] ss:$8 sm:$0xf]
    %v1593 = vlaneseq
    %v1594 = vshrl.u32 %v1593, 7
    %v1595 = vsub.s32 0, %v1594
    %v1596 = vrot.slane %v1587, %v1595
    %v1597 = vlaneseq
    %v1598 = vshrl.u32 %v1597, 7
    %v1599 = vsub.s32 1, %v1598
    %v1600 = vrot.slane %v1587, %v1599
    %v1601 = vlaneseq
    %v1602 = vshrl.u32 %v1601, 7
    %v1603 = vsub.s32 2, %v1602
    %v1604 = vrot.slane %v1587, %v1603
    %v1605 = vlaneseq
    %v1606 = vshrl.u32 %v1605, 7
    %v1607 = vsub.s32 3, %v1606
    %v1608 = vrot.slane %v1587, %v1607
    %v1613 = vmul.f32 %v1353, %v1596
    %v1614 = vmul.f32 %v1353, %v1600
    %v1615 = vmul.f32 %v1353, %v1604
    %v1616 = vmul.f32 %v1353, %v1608
    %v1617 = vmul.f32 %v1358, %v1596
    %v1618 = vmul.f32 %v1358, %v1600
    %v1619 = vmul.f32 %v1358, %v1604
    %v1620 = vmul.f32 %v1358, %v1608
    %v1622 = vlaneseq
    %v1623 = vshrl.u32 %v1622, 7
    %v1624 = vsub.s32 0, %v1623
    %v1625 = vrot.slane %v1589, %v1624
    %v1626 = vlaneseq
    %v1627 = vshrl.u32 %v1626, 7
    %v1628 = vsub.s32 1, %v1627
    %v1629 = vrot.slane %v1589, %v1628
    %v1630 = vlaneseq
    %v1631 = vshrl.u32 %v1630, 7
    %v1632 = vsub.s32 2, %v1631
    %v1633 = vrot.slane %v1589, %v1632
    %v1634 = vlaneseq
    %v1635 = vshrl.u32 %v1634, 7
    %v1636 = vsub.s32 3, %v1635
    %v1637 = vrot.slane %v1589, %v1636
    %v1642 = vadd.f32 %v1613, %v1625
    %v1643 = vadd.f32 %v1614, %v1629
    %v1644 = vadd.f32 %v1615, %v1633
    %v1645 = vadd.f32 %v1616, %v1637
    %v1646 = vadd.f32 %v1617, %v1625
    %v1647 = vadd.f32 %v1618, %v1629
    %v1648 = vadd.f32 %v1619, %v1633
    %v1649 = vadd.f32 %v1620, %v1637
    %v1650 = vmax.f32 %v1642, 0.0
    %v1651 = vmax.f32 %v1643, 0.0
    %v1652 = vmax.f32 %v1644, 0.0
    %v1653 = vmax.f32 %v1645, 0.0
    %v1654 = vmax.f32 %v1646, 0.0
    %v1655 = vmax.f32 %v1647, 0.0
    %v1656 = vmax.f32 %v1648, 0.0
    %v1657 = vmax.f32 %v1649, 0.0
    %v1659 = vlaneseq
    %v1660 = vshrl.u32 %v1659, 7
    %v1661 = vsub.s32 0, %v1660
    %v1662 = vrot.slane %v1591, %v1661
    %v1663 = vlaneseq
    %v1664 = vshrl.u32 %v1663, 7
    %v1665 = vsub.s32 1, %v1664
    %v1666 = vrot.slane %v1591, %v1665
    %v1667 = vlaneseq
    %v1668 = vshrl.u32 %v1667, 7
    %v1669 = vsub.s32 2, %v1668
    %v1670 = vrot.slane %v1591, %v1669
    %v1671 = vlaneseq
    %v1672 = vshrl.u32 %v1671, 7
    %v1673 = vsub.s32 3, %v1672
    %v1674 = vrot.slane %v1591, %v1673
    %v1679 = vmul.f32 %v1650, %v1662
    %v1680 = vmul.f32 %v1651, %v1666
    %v1681 = vmul.f32 %v1652, %v1670
    %v1682 = vmul.f32 %v1653, %v1674
    %v1683 = vmul.f32 %v1654, %v1662
    %v1684 = vmul.f32 %v1655, %v1666
    %v1685 = vmul.f32 %v1656, %v1670
    %v1686 = vmul.f32 %v1657, %v1674
    %v1687 = vadd.f32 %v1679, %v1680
    %v1688 = vadd.f32 %v1687, %v1681
    %v1689 = vadd.f32 %v1688, %v1682
    %1690 = vadd.xlane.f32.xlu0 %v1689
    %v1691 = vpop.xlane.xlu0 %1690
    %v1692 = vadd.f32 %v1683, %v1684
    %v1693 = vadd.f32 %v1692, %v1685
    %v1694 = vadd.f32 %v1693, %v1686
    %1695 = vadd.xlane.f32.xlu0 %v1694
    %v1696 = vpop.xlane.xlu0 %1695
    %v1697 = vadd.f32 %v1584, %v1691
    %v1698 = vadd.f32 %v1585, %v1696
    %s1699 = scalar_lea.vmem [#allocation5], 102
    %v1700 = vld [vmem:[%s1699] ss:$8 sm:$0xf]
    %s1701 = scalar_lea.vmem [#allocation5], 103
    %v1702 = vld [vmem:[%s1701] ss:$8 sm:$0xf]
    %s1703 = scalar_lea.vmem [#allocation5], 224
    %v1704 = vld [vmem:[%s1703] ss:$8 sm:$0xf]
    %v1706 = vlaneseq
    %v1707 = vshrl.u32 %v1706, 7
    %v1708 = vsub.s32 0, %v1707
    %v1709 = vrot.slane %v1700, %v1708
    %v1710 = vlaneseq
    %v1711 = vshrl.u32 %v1710, 7
    %v1712 = vsub.s32 1, %v1711
    %v1713 = vrot.slane %v1700, %v1712
    %v1714 = vlaneseq
    %v1715 = vshrl.u32 %v1714, 7
    %v1716 = vsub.s32 2, %v1715
    %v1717 = vrot.slane %v1700, %v1716
    %v1718 = vlaneseq
    %v1719 = vshrl.u32 %v1718, 7
    %v1720 = vsub.s32 3, %v1719
    %v1721 = vrot.slane %v1700, %v1720
    %v1726 = vmul.f32 %v1353, %v1709
    %v1727 = vmul.f32 %v1353, %v1713
    %v1728 = vmul.f32 %v1353, %v1717
    %v1729 = vmul.f32 %v1353, %v1721
    %v1730 = vmul.f32 %v1358, %v1709
    %v1731 = vmul.f32 %v1358, %v1713
    %v1732 = vmul.f32 %v1358, %v1717
    %v1733 = vmul.f32 %v1358, %v1721
    %v1735 = vlaneseq
    %v1736 = vshrl.u32 %v1735, 7
    %v1737 = vsub.s32 0, %v1736
    %v1738 = vrot.slane %v1702, %v1737
    %v1739 = vlaneseq
    %v1740 = vshrl.u32 %v1739, 7
    %v1741 = vsub.s32 1, %v1740
    %v1742 = vrot.slane %v1702, %v1741
    %v1743 = vlaneseq
    %v1744 = vshrl.u32 %v1743, 7
    %v1745 = vsub.s32 2, %v1744
    %v1746 = vrot.slane %v1702, %v1745
    %v1747 = vlaneseq
    %v1748 = vshrl.u32 %v1747, 7
    %v1749 = vsub.s32 3, %v1748
    %v1750 = vrot.slane %v1702, %v1749
    %v1755 = vadd.f32 %v1726, %v1738
    %v1756 = vadd.f32 %v1727, %v1742
    %v1757 = vadd.f32 %v1728, %v1746
    %v1758 = vadd.f32 %v1729, %v1750
    %v1759 = vadd.f32 %v1730, %v1738
    %v1760 = vadd.f32 %v1731, %v1742
    %v1761 = vadd.f32 %v1732, %v1746
    %v1762 = vadd.f32 %v1733, %v1750
    %v1763 = vmax.f32 %v1755, 0.0
    %v1764 = vmax.f32 %v1756, 0.0
    %v1765 = vmax.f32 %v1757, 0.0
    %v1766 = vmax.f32 %v1758, 0.0
    %v1767 = vmax.f32 %v1759, 0.0
    %v1768 = vmax.f32 %v1760, 0.0
    %v1769 = vmax.f32 %v1761, 0.0
    %v1770 = vmax.f32 %v1762, 0.0
    %v1772 = vlaneseq
    %v1773 = vshrl.u32 %v1772, 7
    %v1774 = vsub.s32 0, %v1773
    %v1775 = vrot.slane %v1704, %v1774
    %v1776 = vlaneseq
    %v1777 = vshrl.u32 %v1776, 7
    %v1778 = vsub.s32 1, %v1777
    %v1779 = vrot.slane %v1704, %v1778
    %v1780 = vlaneseq
    %v1781 = vshrl.u32 %v1780, 7
    %v1782 = vsub.s32 2, %v1781
    %v1783 = vrot.slane %v1704, %v1782
    %v1784 = vlaneseq
    %v1785 = vshrl.u32 %v1784, 7
    %v1786 = vsub.s32 3, %v1785
    %v1787 = vrot.slane %v1704, %v1786
    %v1792 = vmul.f32 %v1763, %v1775
    %v1793 = vmul.f32 %v1764, %v1779
    %v1794 = vmul.f32 %v1765, %v1783
    %v1795 = vmul.f32 %v1766, %v1787
    %v1796 = vmul.f32 %v1767, %v1775
    %v1797 = vmul.f32 %v1768, %v1779
    %v1798 = vmul.f32 %v1769, %v1783
    %v1799 = vmul.f32 %v1770, %v1787
    %v1800 = vadd.f32 %v1792, %v1793
    %v1801 = vadd.f32 %v1800, %v1794
    %v1802 = vadd.f32 %v1801, %v1795
    %1803 = vadd.xlane.f32.xlu0 %v1802
    %v1804 = vpop.xlane.xlu0 %1803
    %v1805 = vadd.f32 %v1796, %v1797
    %v1806 = vadd.f32 %v1805, %v1798
    %v1807 = vadd.f32 %v1806, %v1799
    %1808 = vadd.xlane.f32.xlu0 %v1807
    %v1809 = vpop.xlane.xlu0 %1808
    %v1810 = vadd.f32 %v1697, %v1804
    %v1811 = vadd.f32 %v1698, %v1809
    %v1812 = vstv %s1246
    %v1813 = vadd.f32 %v1810, %v1812
    %v1814 = vadd.f32 %v1811, %v1812
    %v1815 = vadd.f32 %v1348, %v1813
    %v1816 = vadd.f32 %v1349, %v1814
    %v1817 = vsub.f32 %v1815, %v1815
    %v1818 = vsub.f32 %v1816, %v1816
    %s1819 = smul.f32 %s1244, 316.22775
    %v1820 = vstv %s1819
    %v1821 = vmul.f32 %v1817, %v1820
    %v1822 = vmul.f32 %v1818, %v1820
    %v1823 = vstv %s1245
    %v1824 = vadd.f32 %v1821, %v1823
    %v1825 = vadd.f32 %v1822, %v1823
    %s1826 = sld [smem:[#allocation2 + $0x180]]
    %s1827 = sld [smem:[#allocation2 + $0x181]]
    %v1828 = vstv %s1826
    %v1829 = vmul.f32 %v1824, %v1828
    %v1830 = vstv %s1827
    %v1831 = vadd.f32 %v1829, %v1830
    %vm1832 = vcmask 7175
    %1833 = vst.msk [vmem:[%s3 - $0x7] sm:$0x80] %vm1832, %v1831
    %v1834 = vmul.f32 %v1825, %v1828
    %v1835 = vadd.f32 %v1834, %v1830
    %1836 = vst.msk [vmem:[%s3 - $0x6] sm:$0x80] %vm1832, %v1835
    // Predicated region
    $region22: #{tpu_custom_call.1} parent=1 // pred_check
      _
    $region23: #{tpu_custom_call.1} parent=1 // pred_check_branch
      %1838 = sbr.rel (0) target = $region25
    $region24: #{tpu_custom_call.1} parent=1 // pred_region
      _
    $region25: #{tpu_custom_call.1} parent=1 // pred_fallthru
      _
    // Predicated region
    $region26: #{tpu_custom_call.1} parent=1 // pred_check
      _
    $region27: #{tpu_custom_call.1} parent=1 // pred_check_branch
      %1840 = sbr.rel (0) target = $region29
    $region28: #{tpu_custom_call.1} parent=1 // pred_region
      _
    $region29: #{tpu_custom_call.1} parent=1 // pred_fallthru
      _
    %1841 = vsyncpa [#allocation3], 1
    %1842 = vsyncpa [#allocation4], 1

</llo_original>
